<compile_context>
chip_gen: v6e
topology: v6e:2x2x1
jax: 0.10.0
libtpu: 0.0.40
codegen_flags: <defaults>
</compile_context>

<pallas_src>
import math
import functools

import jax
import jax.numpy as jnp
from jax import lax
from jax.experimental import pallas as pl
from jax.experimental.pallas import tpu as pltpu


# ---------------------------------------------------------------------------
# Kernel 1: fused Q/K/V projections (lane-dense, N = d_out).
# ---------------------------------------------------------------------------
def qkv_proj_kernel(x_ref, wq_ref, wk_ref, wv_ref, q_ref, k_ref, v_ref):
    x = x_ref[...].astype(jnp.bfloat16)                       # (tT, d_in)
    q_ref[...] = jnp.dot(x, wq_ref[...],
                         preferred_element_type=jnp.float32).astype(q_ref.dtype)
    k_ref[...] = jnp.dot(x, wk_ref[...],
                         preferred_element_type=jnp.float32).astype(k_ref.dtype)
    v_ref[...] = jnp.dot(x, wv_ref[...],
                         preferred_element_type=jnp.float32).astype(v_ref.dtype)


# ---------------------------------------------------------------------------
# Kernel 2: causal flash attention with online softmax.
#   grid = (batch, q_tiles, kv_tiles) -> ("parallel", "parallel", "arbitrary")
#   q/k/v arrive head-major (b, H, T, hd) bf16, q pre-scaled by 1/sqrt(hd).
# ---------------------------------------------------------------------------
def flash_attn_kernel(q_ref, k_ref, v_ref, ctx_ref, m_sc, l_sc, acc_sc):
    qi = pl.program_id(1)
    ki = pl.program_id(2)
    tq = q_ref.shape[1]
    tk = k_ref.shape[1]

    @pl.when(ki == 0)
    def _init():
        m_sc[...] = jnp.full(m_sc.shape, -jnp.inf, dtype=m_sc.dtype)
        l_sc[...] = jnp.zeros(l_sc.shape, dtype=l_sc.dtype)
        acc_sc[...] = jnp.zeros(acc_sc.shape, dtype=acc_sc.dtype)

    # Causal skip: kv tiles strictly above the diagonal contribute nothing
    # (their k/v blocks are also never re-fetched: index_map clamps ki to qi).
    @pl.when(ki <= qi)
    def _compute():
        q = q_ref[...]                                         # (H, tq, hd) bf16
        k = k_ref[...]                                         # (H, tk, hd) bf16
        v = v_ref[...]                                         # (H, tk, hd) bf16

        # Per-head scores: batched matmul, contraction over head_dim, f32 acc.
        s = lax.dot_general(q, k, (((2,), (2,)), ((0,), (0,))),
                            preferred_element_type=jnp.float32)  # (H, tq, tk)

        # Causal mask as a select (only bites on the diagonal tile).
        rows = qi * tq + lax.broadcasted_iota(jnp.int32, (1, tq, tk), 1)
        cols = ki * tk + lax.broadcasted_iota(jnp.int32, (1, tq, tk), 2)
        s = jnp.where(cols > rows, jnp.float32(-1e30), s)

        # Online-softmax update (f32 statistics).
        m_prev = m_sc[...]                                     # (H, tq, 1)
        m_new = jnp.maximum(m_prev, jnp.max(s, axis=-1, keepdims=True))
        alpha = jnp.exp(m_prev - m_new)
        p = jnp.exp(s - m_new)                                 # (H, tq, tk)
        l_sc[...] = alpha * l_sc[...] + jnp.sum(p, axis=-1, keepdims=True)
        acc_sc[...] = alpha * acc_sc[...] + lax.dot_general(
            p.astype(jnp.bfloat16), v, (((2,), (1,)), ((0,), (0,))),
            preferred_element_type=jnp.float32)                # (H, tq, hd)
        m_sc[...] = m_new

        # TODO(synk): attention-weight dropout omitted (eval-mode / p=0
        # semantics); training parity would use pltpu.prng_seed /
        # pltpu.prng_random_bits on p here.

    # Last contributing kv tile for this q tile (causal): normalize + store.
    @pl.when(ki == qi)
    def _finalize():
        inv_l = pl.reciprocal(l_sc[...], approx=True)
        ctx_ref[...] = (acc_sc[...] * inv_l).astype(ctx_ref.dtype)


# ---------------------------------------------------------------------------
# Kernel 3: output projection -- one full-depth (K = d_out) matmul + bias.
# ---------------------------------------------------------------------------
def out_proj_kernel(ctx_ref, wo_ref, bo_ref, o_ref):
    out = jnp.dot(ctx_ref[...], wo_ref[...],
                  preferred_element_type=jnp.float32)          # (tT, d_out)
    o_ref[...] = (out + bo_ref[...]).astype(o_ref.dtype)


def _pick_tile(n, cap=256):
    """Largest tile <= cap (multiple of 8) dividing n; else the full extent.

    256 is a v7x-safe default (64 MiB VMEM); on v5e/v6e (128 MiB) larger tiles
    and a higher vmem_limit_bytes are viable.
    """
    t = cap
    while t >= 8:
        if n % t == 0:
            return t
        t //= 2
    return n


def multihead_attention(x, wq, wk, wv, wo, bo, *, num_heads):
    """Pallas forward matching the PyTorch module (qkv_bias=False, eval mode)."""
    b, T, d_in = x.shape
    d_out = wq.shape[0]
    assert d_out % num_heads == 0
    H = num_heads
    hd = d_out // H
    scale = 1.0 / math.sqrt(float(hd))

    # One-time weight relayout (PyTorch Linear stores (out_features, in_features));
    # the softmax scale is folded into Wq so the score tiles never see it.
    wq_t = (wq.T * scale).astype(jnp.bfloat16)                 # (d_in, d_out)
    wk_t = wk.T.astype(jnp.bfloat16)
    wv_t = wv.T.astype(jnp.bfloat16)
    wo_t = wo.T.astype(jnp.bfloat16)                           # (d_out, d_out)
    bo2 = bo.reshape(1, d_out).astype(jnp.float32)

    tT = _pick_tile(T)
    nt = T // tT
    tq = tk = tT
    nq = nk = nt

    # ------------------------------------------------------------------ QKV
    q, k, v = pl.pallas_call(
        qkv_proj_kernel,
        out_shape=(jax.ShapeDtypeStruct((b, T, d_out), jnp.bfloat16),) * 3,
        grid_spec=pltpu.PrefetchScalarGridSpec(
            num_scalar_prefetch=0,
            grid=(b, nt),
            in_specs=[
                pl.BlockSpec((None, tT, d_in), lambda bi, ti: (bi, ti, 0)),
                pl.BlockSpec((d_in, d_out), lambda bi, ti: (0, 0)),  # resident
                pl.BlockSpec((d_in, d_out), lambda bi, ti: (0, 0)),  # resident
                pl.BlockSpec((d_in, d_out), lambda bi, ti: (0, 0)),  # resident
            ],
            out_specs=(
                pl.BlockSpec((None, tT, d_out), lambda bi, ti: (bi, ti, 0)),
                pl.BlockSpec((None, tT, d_out), lambda bi, ti: (bi, ti, 0)),
                pl.BlockSpec((None, tT, d_out), lambda bi, ti: (bi, ti, 0)),
            ),
        ),
        compiler_params=pltpu.CompilerParams(
            dimension_semantics=("parallel", "parallel"),
            vmem_limit_bytes=32 * 1024 * 1024,
        ),
    )(x, wq_t, wk_t, wv_t)

    # Head split: wrapper-level layout plumbing (thin (b, T, d_out) tensors),
    # kept out of the kernels so no lane-splitting reshapes lower on-chip.
    # TODO(synk): fold this relayout into the projection kernel's output spec.
    def split_heads(t):
        return t.reshape(b, T, H, hd).transpose(0, 2, 1, 3)    # (b, H, T, hd)

    qh, kh, vh = split_heads(q), split_heads(k), split_heads(v)

    # ------------------------------------------------ causal flash attention
    attn_flops = 2 * b * H * T * T * hd        # QK^T + PV after causal skip
    ctx_h = pl.pallas_call(
        flash_attn_kernel,
        out_shape=jax.ShapeDtypeStruct((b, H, T, hd), jnp.bfloat16),
        grid_spec=pltpu.PrefetchScalarGridSpec(
            num_scalar_prefetch=0,
            grid=(b, nq, nk),
            in_specs=[
                pl.BlockSpec((None, H, tq, hd),
                             lambda bi, qi, ki: (bi, 0, qi, 0)),
                pl.BlockSpec((None, H, tk, hd),
                             lambda bi, qi, ki: (bi, 0, jnp.minimum(ki, qi), 0)),
                pl.BlockSpec((None, H, tk, hd),
                             lambda bi, qi, ki: (bi, 0, jnp.minimum(ki, qi), 0)),
            ],
            out_specs=pl.BlockSpec((None, H, tq, hd),
                                   lambda bi, qi, ki: (bi, 0, qi, 0)),
            scratch_shapes=[
                pltpu.VMEM((H, tq, 1), jnp.float32),   # running max
                pltpu.VMEM((H, tq, 1), jnp.float32),   # running sum
                pltpu.VMEM((H, tq, hd), jnp.float32),  # un-normalized context
            ],
        ),
        compiler_params=pltpu.CompilerParams(
            dimension_semantics=("parallel", "parallel", "arbitrary"),
            vmem_limit_bytes=32 * 1024 * 1024,
        ),
        cost_estimate=pl.CostEstimate(
            flops=int(attn_flops),
            transcendentals=int(b * H * T * T // 2),
            bytes_accessed=int(4 * b * H * T * hd * 2),
        ),
    )(qh, kh, vh)

    # Head merge (layout plumbing) then full-depth output projection kernel.
    ctx = ctx_h.transpose(0, 2, 1, 3).reshape(b, T, d_out)

    out = pl.pallas_call(
        out_proj_kernel,
        out_shape=jax.ShapeDtypeStruct((b, T, d_out), x.dtype),
        grid_spec=pltpu.PrefetchScalarGridSpec(
            num_scalar_prefetch=0,
            grid=(b, nt),
            in_specs=[
                pl.BlockSpec((None, tT, d_out), lambda bi, ti: (bi, ti, 0)),
                pl.BlockSpec((d_out, d_out), lambda bi, ti: (0, 0)),  # resident
                pl.BlockSpec((1, d_out), lambda bi, ti: (0, 0)),      # resident
            ],
            out_specs=pl.BlockSpec((None, tT, d_out), lambda bi, ti: (bi, ti, 0)),
        ),
        compiler_params=pltpu.CompilerParams(
            dimension_semantics=("parallel", "parallel"),
            vmem_limit_bytes=32 * 1024 * 1024,
        ),
    )(ctx, wo_t, bo2)

    return out


def reference_mha(x, wq, wk, wv, wo, bo, *, num_heads):
    """Pure-JAX f32 reference mirroring the PyTorch forward (dropout = identity)."""
    b, T, d_in = x.shape
    d_out = wq.shape[0]
    hd = d_out // num_heads
    q = (x @ wq.T).reshape(b, T, num_heads, hd).transpose(0, 2, 1, 3)
    k = (x @ wk.T).reshape(b, T, num_heads, hd).transpose(0, 2, 1, 3)
    v = (x @ wv.T).reshape(b, T, num_heads, hd).transpose(0, 2, 1, 3)
    s = jnp.einsum("bhqd,bhkd->bhqk", q, k)
    mask = jnp.triu(jnp.ones((T, T), bool), k=1)
    s = jnp.where(mask, -jnp.inf, s)
    w = jax.nn.softmax(s / math.sqrt(hd), axis=-1)
    ctx = jnp.einsum("bhqk,bhkd->bhqd", w, v)
    ctx = ctx.transpose(0, 2, 1, 3).reshape(b, T, d_out)
    return ctx @ wo.T + bo


if __name__ == "__main__":
    # Small shapes consistent with the module:
    #   batch=2, seq (num_token)=8, d_in=32, d_out=32, num_heads=4, head_dim=8
    b, T, d_in, d_out, num_heads = 2, 8, 32, 32, 4

    key = jax.random.PRNGKey(0)
    kx, kq, kk, kv, ko, kb = jax.random.split(key, 6)

    x = jax.random.normal(kx, (b, T, d_in), dtype=jnp.float32)
    # PyTorch Linear weights are (out_features, in_features); qkv_bias=False.
    wq = jax.random.normal(kq, (d_out, d_in), dtype=jnp.float32) * 0.1
    wk = jax.random.normal(kk, (d_out, d_in), dtype=jnp.float32) * 0.1
    wv = jax.random.normal(kv, (d_out, d_in), dtype=jnp.float32) * 0.1
    wo = jax.random.normal(ko, (d_out, d_out), dtype=jnp.float32) * 0.1
    bo = jax.random.normal(kb, (d_out,), dtype=jnp.float32) * 0.1

    mha = jax.jit(functools.partial(multihead_attention, num_heads=num_heads))
    out = jax.block_until_ready(mha(x, wq, wk, wv, wo, bo))

    ref = reference_mha(x, wq, wk, wv, wo, bo, num_heads=num_heads)
    assert out.shape == (b, T, d_out)
    # bf16 MXU operands + approx reciprocal vs an all-f32 reference.
    assert jnp.allclose(out, ref, atol=5e-2, rtol=5e-2), "mismatch vs reference"

    print("KERNEL_OK")
</pallas_src>

<mosaic_0001>
module attributes {stable_mosaic.version = 11 : i64} {
  func.func @qkv_proj_kernel(%arg0: i32, %arg1: i32, %arg2: memref<1x8x32xf32, #tpu.memory_space<vmem>>, %arg3: memref<32x32xbf16, #tpu.memory_space<vmem>>, %arg4: memref<32x32xbf16, #tpu.memory_space<vmem>>, %arg5: memref<32x32xbf16, #tpu.memory_space<vmem>>, %arg6: memref<1x8x32xbf16, #tpu.memory_space<vmem>>, %arg7: memref<1x8x32xbf16, #tpu.memory_space<vmem>>, %arg8: memref<1x8x32xbf16, #tpu.memory_space<vmem>>) attributes {dimension_semantics = [#tpu.dimension_semantics<parallel>, #tpu.dimension_semantics<parallel>], iteration_bounds = array<i64: 2, 1>, scalar_prefetch = 0 : i64, scratch_operands = 0 : i64, tpu.core_type = #tpu.core_type<tc>, window_params = [{transform_indices = @transform_0, window_bounds = array<i64: 1, 8, 32>}, {pipeline_mode = #tpu.pipeline_mode<synchronous>, transform_indices = @transform_1, window_bounds = array<i64: 32, 32>}, {pipeline_mode = #tpu.pipeline_mode<synchronous>, transform_indices = @transform_2, window_bounds = array<i64: 32, 32>}, {pipeline_mode = #tpu.pipeline_mode<synchronous>, transform_indices = @transform_3, window_bounds = array<i64: 32, 32>}, {transform_indices = @transform_4, window_bounds = array<i64: 1, 8, 32>}, {transform_indices = @transform_5, window_bounds = array<i64: 1, 8, 32>}, {transform_indices = @transform_6, window_bounds = array<i64: 1, 8, 32>}]} {
    %c0 = arith.constant 0 : index
    %c0_0 = arith.constant 0 : index
    %c0_1 = arith.constant 0 : index
    %0 = vector.load %arg2[%c0, %c0_0, %c0_1] : memref<1x8x32xf32, #tpu.memory_space<vmem>>, vector<1x8x32xf32>
    %1 = vector.shape_cast %0 : vector<1x8x32xf32> to vector<8x32xf32>
    %2 = arith.truncf %1 : vector<8x32xf32> to vector<8x32xbf16>
    %c0_2 = arith.constant 0 : index
    %c0_3 = arith.constant 0 : index
    %3 = vector.load %arg3[%c0_2, %c0_3] : memref<32x32xbf16, #tpu.memory_space<vmem>>, vector<32x32xbf16>
    %cst = arith.constant dense<0.000000e+00> : vector<8x32xf32>
    %4 = tpu.matmul %2, %3, %cst {dimension_numbers = #tpu.dot_dimension_numbers<[1], [0], [0], [1], [0, 0, 1, 1], [], []>} : vector<8x32xbf16>, vector<32x32xbf16>, vector<8x32xf32> -> vector<8x32xf32>
    %5 = arith.truncf %4 : vector<8x32xf32> to vector<8x32xbf16>
    %c0_4 = arith.constant 0 : index
    %c0_5 = arith.constant 0 : index
    %c0_6 = arith.constant 0 : index
    %6 = vector.load %arg6[%c0_4, %c0_5, %c0_6] : memref<1x8x32xbf16, #tpu.memory_space<vmem>>, vector<1x8x32xbf16>
    %7 = vector.shape_cast %6 : vector<1x8x32xbf16> to vector<8x32xbf16>
    %8 = vector.shape_cast %5 : vector<8x32xbf16> to vector<1x8x32xbf16>
    tpu.vector_store %arg6[%c0_4, %c0_5, %c0_6], %8 {strides = array<i32>} : memref<1x8x32xbf16, #tpu.memory_space<vmem>>, vector<1x8x32xbf16>,
    %c0_7 = arith.constant 0 : index
    %c0_8 = arith.constant 0 : index
    %9 = vector.load %arg4[%c0_7, %c0_8] : memref<32x32xbf16, #tpu.memory_space<vmem>>, vector<32x32xbf16>
    %cst_9 = arith.constant dense<0.000000e+00> : vector<8x32xf32>
    %10 = tpu.matmul %2, %9, %cst_9 {dimension_numbers = #tpu.dot_dimension_numbers<[1], [0], [0], [1], [0, 0, 1, 1], [], []>} : vector<8x32xbf16>, vector<32x32xbf16>, vector<8x32xf32> -> vector<8x32xf32>
    %11 = arith.truncf %10 : vector<8x32xf32> to vector<8x32xbf16>
    %c0_10 = arith.constant 0 : index
    %c0_11 = arith.constant 0 : index
    %c0_12 = arith.constant 0 : index
    %12 = vector.load %arg7[%c0_10, %c0_11, %c0_12] : memref<1x8x32xbf16, #tpu.memory_space<vmem>>, vector<1x8x32xbf16>
    %13 = vector.shape_cast %12 : vector<1x8x32xbf16> to vector<8x32xbf16>
    %14 = vector.shape_cast %11 : vector<8x32xbf16> to vector<1x8x32xbf16>
    tpu.vector_store %arg7[%c0_10, %c0_11, %c0_12], %14 {strides = array<i32>} : memref<1x8x32xbf16, #tpu.memory_space<vmem>>, vector<1x8x32xbf16>,
    %c0_13 = arith.constant 0 : index
    %c0_14 = arith.constant 0 : index
    %15 = vector.load %arg5[%c0_13, %c0_14] : memref<32x32xbf16, #tpu.memory_space<vmem>>, vector<32x32xbf16>
    %cst_15 = arith.constant dense<0.000000e+00> : vector<8x32xf32>
    %16 = tpu.matmul %2, %15, %cst_15 {dimension_numbers = #tpu.dot_dimension_numbers<[1], [0], [0], [1], [0, 0, 1, 1], [], []>} : vector<8x32xbf16>, vector<32x32xbf16>, vector<8x32xf32> -> vector<8x32xf32>
    %17 = arith.truncf %16 : vector<8x32xf32> to vector<8x32xbf16>
    %c0_16 = arith.constant 0 : index
    %c0_17 = arith.constant 0 : index
    %c0_18 = arith.constant 0 : index
    %18 = vector.load %arg8[%c0_16, %c0_17, %c0_18] : memref<1x8x32xbf16, #tpu.memory_space<vmem>>, vector<1x8x32xbf16>
    %19 = vector.shape_cast %18 : vector<1x8x32xbf16> to vector<8x32xbf16>
    %20 = vector.shape_cast %17 : vector<8x32xbf16> to vector<1x8x32xbf16>
    tpu.vector_store %arg8[%c0_16, %c0_17, %c0_18], %20 {strides = array<i32>} : memref<1x8x32xbf16, #tpu.memory_space<vmem>>, vector<1x8x32xbf16>,
    return
  }
  func.func @transform_0(%arg0: i32, %arg1: i32) -> (i32, i32, i32) {
    %c0_i32 = arith.constant 0 : i32
    %c0_i32_0 = arith.constant 0 : i32
    return %arg0, %arg1, %c0_i32 : i32, i32, i32
  }
  func.func @transform_1(%arg0: i32, %arg1: i32) -> (i32, i32) {
    %c0_i32 = arith.constant 0 : i32
    %c0_i32_0 = arith.constant 0 : i32
    %c0_i32_1 = arith.constant 0 : i32
    return %c0_i32, %c0_i32_0 : i32, i32
  }
  func.func @transform_2(%arg0: i32, %arg1: i32) -> (i32, i32) {
    %c0_i32 = arith.constant 0 : i32
    %c0_i32_0 = arith.constant 0 : i32
    %c0_i32_1 = arith.constant 0 : i32
    return %c0_i32, %c0_i32_0 : i32, i32
  }
  func.func @transform_3(%arg0: i32, %arg1: i32) -> (i32, i32) {
    %c0_i32 = arith.constant 0 : i32
    %c0_i32_0 = arith.constant 0 : i32
    %c0_i32_1 = arith.constant 0 : i32
    return %c0_i32, %c0_i32_0 : i32, i32
  }
  func.func @transform_4(%arg0: i32, %arg1: i32) -> (i32, i32, i32) {
    %c0_i32 = arith.constant 0 : i32
    %c0_i32_0 = arith.constant 0 : i32
    return %arg0, %arg1, %c0_i32 : i32, i32, i32
  }
  func.func @transform_5(%arg0: i32, %arg1: i32) -> (i32, i32, i32) {
    %c0_i32 = arith.constant 0 : i32
    %c0_i32_0 = arith.constant 0 : i32
    return %arg0, %arg1, %c0_i32 : i32, i32, i32
  }
  func.func @transform_6(%arg0: i32, %arg1: i32) -> (i32, i32, i32) {
    %c0_i32 = arith.constant 0 : i32
    %c0_i32_0 = arith.constant 0 : i32
    return %arg0, %arg1, %c0_i32 : i32, i32, i32
  }
}

module attributes {stable_mosaic.version = 11 : i64} {
  func.func @flash_attn_kernel(%arg0: i32, %arg1: i32, %arg2: i32, %arg3: memref<1x4x8x8xbf16, #tpu.memory_space<vmem>>, %arg4: memref<1x4x8x8xbf16, #tpu.memory_space<vmem>>, %arg5: memref<1x4x8x8xbf16, #tpu.memory_space<vmem>>, %arg6: memref<1x4x8x8xbf16, #tpu.memory_space<vmem>>, %arg7: memref<4x8x1xf32, #tpu.memory_space<vmem>>, %arg8: memref<4x8x1xf32, #tpu.memory_space<vmem>>, %arg9: memref<4x8x8xf32, #tpu.memory_space<vmem>>) attributes {dimension_semantics = [#tpu.dimension_semantics<parallel>, #tpu.dimension_semantics<parallel>, #tpu.dimension_semantics<arbitrary>], iteration_bounds = array<i64: 2, 1, 1>, scalar_prefetch = 0 : i64, scratch_operands = 3 : i64, tpu.core_type = #tpu.core_type<tc>, window_params = [{transform_indices = @transform_0, window_bounds = array<i64: 1, 4, 8, 8>}, {transform_indices = @transform_1, window_bounds = array<i64: 1, 4, 8, 8>}, {transform_indices = @transform_2, window_bounds = array<i64: 1, 4, 8, 8>}, {transform_indices = @transform_3, window_bounds = array<i64: 1, 4, 8, 8>}]} {
    %c0_i32 = arith.constant 0 : i32
    %0 = arith.cmpi eq, %arg2, %c0_i32 : i32
    %1 = arith.extui %0 : i1 to i32
    %c0_i32_0 = arith.constant 0 : i32
    %2 = arith.cmpi ne, %1, %c0_i32_0 : i32
    scf.if %2 {
      %cst = arith.constant 0xFF800000 : f32
      %9 = vector.broadcast %cst : f32 to vector<4x8x1xf32>
      %c0 = arith.constant 0 : index
      %c0_3 = arith.constant 0 : index
      %c0_4 = arith.constant 0 : index
      %10 = vector.load %arg7[%c0, %c0_3, %c0_4] : memref<4x8x1xf32, #tpu.memory_space<vmem>>, vector<4x8x1xf32>
      tpu.vector_store %arg7[%c0, %c0_3, %c0_4], %9 {strides = array<i32>} : memref<4x8x1xf32, #tpu.memory_space<vmem>>, vector<4x8x1xf32>,
      %cst_5 = arith.constant 0.000000e+00 : f32
      %11 = vector.broadcast %cst_5 : f32 to vector<4x8x1xf32>
      %c0_6 = arith.constant 0 : index
      %c0_7 = arith.constant 0 : index
      %c0_8 = arith.constant 0 : index
      %12 = vector.load %arg8[%c0_6, %c0_7, %c0_8] : memref<4x8x1xf32, #tpu.memory_space<vmem>>, vector<4x8x1xf32>
      tpu.vector_store %arg8[%c0_6, %c0_7, %c0_8], %11 {strides = array<i32>} : memref<4x8x1xf32, #tpu.memory_space<vmem>>, vector<4x8x1xf32>,
      %cst_9 = arith.constant 0.000000e+00 : f32
      %13 = vector.broadcast %cst_9 : f32 to vector<4x8x8xf32>
      %c0_10 = arith.constant 0 : index
      %c0_11 = arith.constant 0 : index
      %c0_12 = arith.constant 0 : index
      %14 = vector.load %arg9[%c0_10, %c0_11, %c0_12] : memref<4x8x8xf32, #tpu.memory_space<vmem>>, vector<4x8x8xf32>
      tpu.vector_store %arg9[%c0_10, %c0_11, %c0_12], %13 {strides = array<i32>} : memref<4x8x8xf32, #tpu.memory_space<vmem>>, vector<4x8x8xf32>,
    } else {
    }
    %3 = arith.cmpi sle, %arg2, %arg1 : i32
    %4 = arith.extui %3 : i1 to i32
    %c0_i32_1 = arith.constant 0 : i32
    %5 = arith.cmpi ne, %4, %c0_i32_1 : i32
    scf.if %5 {
      %c0 = arith.constant 0 : index
      %c0_3 = arith.constant 0 : index
      %c0_4 = arith.constant 0 : index
      %c0_5 = arith.constant 0 : index
      %9 = vector.load %arg3[%c0, %c0_3, %c0_4, %c0_5] : memref<1x4x8x8xbf16, #tpu.memory_space<vmem>>, vector<1x4x8x8xbf16>
      %10 = vector.shape_cast %9 : vector<1x4x8x8xbf16> to vector<4x8x8xbf16>
      %c0_6 = arith.constant 0 : index
      %c0_7 = arith.constant 0 : index
      %c0_8 = arith.constant 0 : index
      %c0_9 = arith.constant 0 : index
      %11 = vector.load %arg4[%c0_6, %c0_7, %c0_8, %c0_9] : memref<1x4x8x8xbf16, #tpu.memory_space<vmem>>, vector<1x4x8x8xbf16>
      %12 = vector.shape_cast %11 : vector<1x4x8x8xbf16> to vector<4x8x8xbf16>
      %c0_10 = arith.constant 0 : index
      %c0_11 = arith.constant 0 : index
      %c0_12 = arith.constant 0 : index
      %c0_13 = arith.constant 0 : index
      %13 = vector.load %arg5[%c0_10, %c0_11, %c0_12, %c0_13] : memref<1x4x8x8xbf16, #tpu.memory_space<vmem>>, vector<1x4x8x8xbf16>
      %14 = vector.shape_cast %13 : vector<1x4x8x8xbf16> to vector<4x8x8xbf16>
      %cst = arith.constant dense<0.000000e+00> : vector<4x8x8xf32>
      %15 = tpu.matmul %10, %12, %cst {dimension_numbers = #tpu.dot_dimension_numbers<[2], [2], [1], [1], [0, 0, 0, 1, 1, 1], [0], [0]>} : vector<4x8x8xbf16>, vector<4x8x8xbf16>, vector<4x8x8xf32> -> vector<4x8x8xf32>
      %c8_i32 = arith.constant 8 : i32
      %16 = arith.muli %arg1, %c8_i32 : i32
      %17 = tpu.iota {dimensions = array<i32: 1>} : vector<1x8x8xi32>
      %18 = vector.broadcast %16 : i32 to vector<1x8x8xi32>
      %19 = arith.addi %18, %17 : vector<1x8x8xi32>
      %c8_i32_14 = arith.constant 8 : i32
      %20 = arith.muli %arg2, %c8_i32_14 : i32
      %21 = tpu.iota {dimensions = array<i32: 2>} : vector<1x8x8xi32>
      %22 = vector.broadcast %20 : i32 to vector<1x8x8xi32>
      %23 = arith.addi %22, %21 : vector<1x8x8xi32>
      %24 = arith.cmpi sgt, %23, %19 : vector<1x8x8xi32>
      %cst_15 = arith.constant -1.000000e+30 : f32
      %25 = vector.shape_cast %24 : vector<1x8x8xi1> to vector<1x8x8xi1>
      %26 = vector.broadcast %25 : vector<1x8x8xi1> to vector<4x8x8xi1>
      %27 = vector.broadcast %cst_15 : f32 to vector<4x8x8xf32>
      %28 = arith.select %26, %27, %15 : vector<4x8x8xi1>, vector<4x8x8xf32>
      %c0_16 = arith.constant 0 : index
      %c0_17 = arith.constant 0 : index
      %c0_18 = arith.constant 0 : index
      %29 = vector.load %arg7[%c0_16, %c0_17, %c0_18] : memref<4x8x1xf32, #tpu.memory_space<vmem>>, vector<4x8x1xf32>
      %cst_19 = arith.constant dense<0xFF800000> : vector<4x8xf32>
      %30 = vector.multi_reduction <maximumf>, %28, %cst_19 [2] : vector<4x8x8xf32> to vector<4x8xf32>
      %31 = vector.shape_cast %30 : vector<4x8xf32> to vector<4x8x1xf32>
      %32 = arith.maximumf %29, %31 : vector<4x8x1xf32>
      %33 = arith.subf %29, %32 : vector<4x8x1xf32>
      %34 = math.exp %33 : vector<4x8x1xf32>
      %35 = vector.broadcast %32 : vector<4x8x1xf32> to vector<4x8x8xf32>
      %36 = arith.subf %28, %35 : vector<4x8x8xf32>
      %37 = math.exp %36 : vector<4x8x8xf32>
      %c0_20 = arith.constant 0 : index
      %c0_21 = arith.constant 0 : index
      %c0_22 = arith.constant 0 : index
      %38 = vector.load %arg8[%c0_20, %c0_21, %c0_22] : memref<4x8x1xf32, #tpu.memory_space<vmem>>, vector<4x8x1xf32>
      %39 = arith.mulf %34, %38 : vector<4x8x1xf32>
      %cst_23 = arith.constant dense<0.000000e+00> : vector<4x8xf32>
      %40 = vector.multi_reduction <add>, %37, %cst_23 [2] : vector<4x8x8xf32> to vector<4x8xf32>
      %41 = vector.shape_cast %40 : vector<4x8xf32> to vector<4x8x1xf32>
      %42 = arith.addf %39, %41 : vector<4x8x1xf32>
      %c0_24 = arith.constant 0 : index
      %c0_25 = arith.constant 0 : index
      %c0_26 = arith.constant 0 : index
      %43 = vector.load %arg8[%c0_24, %c0_25, %c0_26] : memref<4x8x1xf32, #tpu.memory_space<vmem>>, vector<4x8x1xf32>
      tpu.vector_store %arg8[%c0_24, %c0_25, %c0_26], %42 {strides = array<i32>} : memref<4x8x1xf32, #tpu.memory_space<vmem>>, vector<4x8x1xf32>,
      %c0_27 = arith.constant 0 : index
      %c0_28 = arith.constant 0 : index
      %c0_29 = arith.constant 0 : index
      %44 = vector.load %arg9[%c0_27, %c0_28, %c0_29] : memref<4x8x8xf32, #tpu.memory_space<vmem>>, vector<4x8x8xf32>
      %45 = vector.broadcast %34 : vector<4x8x1xf32> to vector<4x8x8xf32>
      %46 = arith.mulf %45, %44 : vector<4x8x8xf32>
      %47 = arith.truncf %37 : vector<4x8x8xf32> to vector<4x8x8xbf16>
      %cst_30 = arith.constant dense<0.000000e+00> : vector<4x8x8xf32>
      %48 = tpu.matmul %47, %14, %cst_30 {dimension_numbers = #tpu.dot_dimension_numbers<[2], [1], [1], [2], [0, 0, 0, 1, 1, 2], [0], [0]>} : vector<4x8x8xbf16>, vector<4x8x8xbf16>, vector<4x8x8xf32> -> vector<4x8x8xf32>
      %49 = arith.addf %46, %48 : vector<4x8x8xf32>
      %c0_31 = arith.constant 0 : index
      %c0_32 = arith.constant 0 : index
      %c0_33 = arith.constant 0 : index
      %50 = vector.load %arg9[%c0_31, %c0_32, %c0_33] : memref<4x8x8xf32, #tpu.memory_space<vmem>>, vector<4x8x8xf32>
      tpu.vector_store %arg9[%c0_31, %c0_32, %c0_33], %49 {strides = array<i32>} : memref<4x8x8xf32, #tpu.memory_space<vmem>>, vector<4x8x8xf32>,
      %c0_34 = arith.constant 0 : index
      %c0_35 = arith.constant 0 : index
      %c0_36 = arith.constant 0 : index
      %51 = vector.load %arg7[%c0_34, %c0_35, %c0_36] : memref<4x8x1xf32, #tpu.memory_space<vmem>>, vector<4x8x1xf32>
      tpu.vector_store %arg7[%c0_34, %c0_35, %c0_36], %32 {strides = array<i32>} : memref<4x8x1xf32, #tpu.memory_space<vmem>>, vector<4x8x1xf32>,
    } else {
    }
    %6 = arith.cmpi eq, %arg2, %arg1 : i32
    %7 = arith.extui %6 : i1 to i32
    %c0_i32_2 = arith.constant 0 : i32
    %8 = arith.cmpi ne, %7, %c0_i32_2 : i32
    scf.if %8 {
      %c0 = arith.constant 0 : index
      %c0_3 = arith.constant 0 : index
      %c0_4 = arith.constant 0 : index
      %9 = vector.load %arg8[%c0, %c0_3, %c0_4] : memref<4x8x1xf32, #tpu.memory_space<vmem>>, vector<4x8x1xf32>
      %10 = tpu.reciprocal %9 {approx = true} : vector<4x8x1xf32> -> vector<4x8x1xf32>
      %c0_5 = arith.constant 0 : index
      %c0_6 = arith.constant 0 : index
      %c0_7 = arith.constant 0 : index
      %11 = vector.load %arg9[%c0_5, %c0_6, %c0_7] : memref<4x8x8xf32, #tpu.memory_space<vmem>>, vector<4x8x8xf32>
      %12 = vector.broadcast %10 : vector<4x8x1xf32> to vector<4x8x8xf32>
      %13 = arith.mulf %11, %12 : vector<4x8x8xf32>
      %14 = arith.truncf %13 : vector<4x8x8xf32> to vector<4x8x8xbf16>
      %c0_8 = arith.constant 0 : index
      %c0_9 = arith.constant 0 : index
      %c0_10 = arith.constant 0 : index
      %c0_11 = arith.constant 0 : index
      %15 = vector.load %arg6[%c0_8, %c0_9, %c0_10, %c0_11] : memref<1x4x8x8xbf16, #tpu.memory_space<vmem>>, vector<1x4x8x8xbf16>
      %16 = vector.shape_cast %15 : vector<1x4x8x8xbf16> to vector<4x8x8xbf16>
      %17 = vector.shape_cast %14 : vector<4x8x8xbf16> to vector<1x4x8x8xbf16>
      tpu.vector_store %arg6[%c0_8, %c0_9, %c0_10, %c0_11], %17 {strides = array<i32>} : memref<1x4x8x8xbf16, #tpu.memory_space<vmem>>, vector<1x4x8x8xbf16>,
    } else {
    }
    return
  }
  func.func @transform_0(%arg0: i32, %arg1: i32, %arg2: i32) -> (i32, i32, i32, i32) {
    %c0_i32 = arith.constant 0 : i32
    %c0_i32_0 = arith.constant 0 : i32
    %c0_i32_1 = arith.constant 0 : i32
    return %arg0, %c0_i32, %arg1, %c0_i32_0 : i32, i32, i32, i32
  }
  func.func @transform_1(%arg0: i32, %arg1: i32, %arg2: i32) -> (i32, i32, i32, i32) {
    %0 = arith.minsi %arg2, %arg1 : i32
    %c0_i32 = arith.constant 0 : i32
    %c0_i32_0 = arith.constant 0 : i32
    %c0_i32_1 = arith.constant 0 : i32
    return %arg0, %c0_i32, %0, %c0_i32_0 : i32, i32, i32, i32
  }
  func.func @transform_2(%arg0: i32, %arg1: i32, %arg2: i32) -> (i32, i32, i32, i32) {
    %0 = arith.minsi %arg2, %arg1 : i32
    %c0_i32 = arith.constant 0 : i32
    %c0_i32_0 = arith.constant 0 : i32
    %c0_i32_1 = arith.constant 0 : i32
    return %arg0, %c0_i32, %0, %c0_i32_0 : i32, i32, i32, i32
  }
  func.func @transform_3(%arg0: i32, %arg1: i32, %arg2: i32) -> (i32, i32, i32, i32) {
    %c0_i32 = arith.constant 0 : i32
    %c0_i32_0 = arith.constant 0 : i32
    %c0_i32_1 = arith.constant 0 : i32
    return %arg0, %c0_i32, %arg1, %c0_i32_0 : i32, i32, i32, i32
  }
}

module attributes {stable_mosaic.version = 11 : i64} {
  func.func @out_proj_kernel(%arg0: i32, %arg1: i32, %arg2: memref<1x8x32xbf16, #tpu.memory_space<vmem>>, %arg3: memref<32x32xbf16, #tpu.memory_space<vmem>>, %arg4: memref<1x32xf32, #tpu.memory_space<vmem>>, %arg5: memref<1x8x32xf32, #tpu.memory_space<vmem>>) attributes {dimension_semantics = [#tpu.dimension_semantics<parallel>, #tpu.dimension_semantics<parallel>], iteration_bounds = array<i64: 2, 1>, scalar_prefetch = 0 : i64, scratch_operands = 0 : i64, tpu.core_type = #tpu.core_type<tc>, window_params = [{transform_indices = @transform_0, window_bounds = array<i64: 1, 8, 32>}, {pipeline_mode = #tpu.pipeline_mode<synchronous>, transform_indices = @transform_1, window_bounds = array<i64: 32, 32>}, {pipeline_mode = #tpu.pipeline_mode<synchronous>, transform_indices = @transform_2, window_bounds = array<i64: 1, 32>}, {transform_indices = @transform_3, window_bounds = array<i64: 1, 8, 32>}]} {
    %c0 = arith.constant 0 : index
    %c0_0 = arith.constant 0 : index
    %c0_1 = arith.constant 0 : index
    %0 = vector.load %arg2[%c0, %c0_0, %c0_1] : memref<1x8x32xbf16, #tpu.memory_space<vmem>>, vector<1x8x32xbf16>
    %1 = vector.shape_cast %0 : vector<1x8x32xbf16> to vector<8x32xbf16>
    %c0_2 = arith.constant 0 : index
    %c0_3 = arith.constant 0 : index
    %2 = vector.load %arg3[%c0_2, %c0_3] : memref<32x32xbf16, #tpu.memory_space<vmem>>, vector<32x32xbf16>
    %cst = arith.constant dense<0.000000e+00> : vector<8x32xf32>
    %3 = tpu.matmul %1, %2, %cst {dimension_numbers = #tpu.dot_dimension_numbers<[1], [0], [0], [1], [0, 0, 1, 1], [], []>} : vector<8x32xbf16>, vector<32x32xbf16>, vector<8x32xf32> -> vector<8x32xf32>
    %c0_4 = arith.constant 0 : index
    %c0_5 = arith.constant 0 : index
    %4 = vector.load %arg4[%c0_4, %c0_5] : memref<1x32xf32, #tpu.memory_space<vmem>>, vector<1x32xf32>
    %5 = vector.broadcast %4 : vector<1x32xf32> to vector<8x32xf32>
    %6 = arith.addf %3, %5 : vector<8x32xf32>
    %c0_6 = arith.constant 0 : index
    %c0_7 = arith.constant 0 : index
    %c0_8 = arith.constant 0 : index
    %7 = vector.load %arg5[%c0_6, %c0_7, %c0_8] : memref<1x8x32xf32, #tpu.memory_space<vmem>>, vector<1x8x32xf32>
    %8 = vector.shape_cast %7 : vector<1x8x32xf32> to vector<8x32xf32>
    %9 = vector.shape_cast %6 : vector<8x32xf32> to vector<1x8x32xf32>
    tpu.vector_store %arg5[%c0_6, %c0_7, %c0_8], %9 {strides = array<i32>} : memref<1x8x32xf32, #tpu.memory_space<vmem>>, vector<1x8x32xf32>,
    return
  }
  func.func @transform_0(%arg0: i32, %arg1: i32) -> (i32, i32, i32) {
    %c0_i32 = arith.constant 0 : i32
    %c0_i32_0 = arith.constant 0 : i32
    return %arg0, %arg1, %c0_i32 : i32, i32, i32
  }
  func.func @transform_1(%arg0: i32, %arg1: i32) -> (i32, i32) {
    %c0_i32 = arith.constant 0 : i32
    %c0_i32_0 = arith.constant 0 : i32
    %c0_i32_1 = arith.constant 0 : i32
    return %c0_i32, %c0_i32_0 : i32, i32
  }
  func.func @transform_2(%arg0: i32, %arg1: i32) -> (i32, i32) {
    %c0_i32 = arith.constant 0 : i32
    %c0_i32_0 = arith.constant 0 : i32
    %c0_i32_1 = arith.constant 0 : i32
    return %c0_i32, %c0_i32_0 : i32, i32
  }
  func.func @transform_3(%arg0: i32, %arg1: i32) -> (i32, i32, i32) {
    %c0_i32 = arith.constant 0 : i32
    %c0_i32_0 = arith.constant 0 : i32
    return %arg0, %arg1, %c0_i32 : i32, i32, i32
  }
}

</mosaic_0001>

<llo_original>
// kernel: multihead_attention.3
$region0: #{multihead_attention.3}
  #allocation0 [shape = 'u32[]', space=smem, size = 0x4, offset = 0x4, fixed_abs, tag = 'smem constant byte address 0x4 - core index']
  #allocation1 [shape = 'u32[144,128]{1,0:T(1,128)}', space=vmem, size = 0x12000, scoped, tag = 'internal scratch']
  %s0 = inlined_call_operand.vmem [shape: f32[2,8,32], index: 0, kind: input, shape index: {}]
  %s1 = inlined_call_operand.vmem [shape: bf16[32,32], index: 1, kind: input, shape index: {}]
  %s2 = inlined_call_operand.vmem [shape: bf16[32,32], index: 2, kind: input, shape index: {}]
  %s3 = inlined_call_operand.vmem [shape: bf16[32,32], index: 3, kind: input, shape index: {}]
  %s4 = inlined_call_operand.vmem [shape: bf16[2,8,32], index: 4, kind: output, shape index: {0}]
  %s5 = inlined_call_operand.vmem [shape: bf16[2,8,32], index: 5, kind: output, shape index: {1}]
  %s6 = inlined_call_operand.vmem [shape: bf16[2,8,32], index: 6, kind: output, shape index: {2}]
  %7 = xla_tuple %s4, %s5, %s6
  %s8 = sld [smem:[#allocation0]]
  $region65: #{multihead_attention.3} parent=0
    _
  %s10 = ssub.s32 1, %s8
  %s11 = scalar_select 0, %s10, %s8
  loop: start=0, step=1, limit=4
  $region2: #{multihead_attention.3} parent=0 // loop_pre_header
    _
  $region3: #{multihead_attention.3} parent=0 // loop_header
    %s13 = sphi 0, %s17
    %p14 = scmp.ge.s32.totalorder %s13, 4
    %s20 = sphi 0, %s32
    %s21 = sphi 0, %s28
    %s22 = sphi 0, %s20
    %s23 = sphi 0, %s21
    %s24 = sphi 0, %s22
    %s25 = sphi 0, %s23
    %s37 = sphi 0, %s39
    %s40 = sphi 0, %s37
    %s41 = sphi 0, %s40
    %s57 = sphi 0, %s41
    %s61 = sphi 0, %s61
    %s63 = sphi 0, %s61
    %s64 = sphi 0, %s63
    %s78 = sphi 0, %s64
    %s82 = sphi 0, %s82
    %s84 = sphi 0, %s82
    %s85 = sphi 0, %s84
    %s99 = sphi 0, %s85
    %s103 = sphi 0, %s103
    %s105 = sphi 0, %s103
    %s106 = sphi 0, %s105
    %s120 = sphi 0, %s106
    %s128 = sphi 0, %s130
    %s131 = sphi 0, %s128
    %s132 = sphi 0, %s131
    %s148 = sphi 0, %s132
    %s156 = sphi 0, %s158
    %s159 = sphi 0, %s156
    %s160 = sphi 0, %s159
    %s176 = sphi 0, %s160
    %s184 = sphi 0, %s186
    %s187 = sphi 0, %s184
    %s188 = sphi 0, %s187
    %s204 = sphi 0, %s188
  $region4: #{multihead_attention.3} parent=0 // loop_header_branch
    %16 = sbr.rel (%p14) target = $region8
  $region5: #{multihead_attention.3} parent=0 // loop_body
    %s18 = ssub.s32 %s13, 1
    %s19 = ssub.s32 %s13, 2
    %s26 = sadd.s32 1, %s21
    %p27 = scmp.ge.s32.totalorder %s26, 1
    %s28 = scalar_select %p27, 0, %s26
    %s29 = sadd.s32 1, %s20
    %s30 = scalar_select %p27, %s29, %s20
    %p31 = scmp.ge.s32.totalorder %s30, 2
    %s32 = scalar_select %p31, 0, %s30
    %s33 = ssub.s32 %s20, %s32
    %s34 = ssub.s32 %s21, %s28
    %s35 = sor.u32 %s33, %s34
    %p36 = scmp.eq.s32.totalorder %s35, 0
    %s38 = sadd.s32 %s37, 1
    %s39 = scalar_select %p36, %s37, %s38
    %p42 = pneg %p36
    %p43 = scmp.eq.s32.totalorder %s13, 1
    %p44 = por %p42, %p43
    %p45 = scmp.ne.s32.totalorder %s37, %s40
    %p46 = scmp.eq.s32.totalorder %s13, 0
    %p47 = por %p45, %p46
    %p48 = scmp.ne.s32.totalorder %s37, %s40
    %p49 = scmp.eq.s32.totalorder %s18, 1
    %p50 = por %p48, %p49
    %p51 = scmp.ne.s32.totalorder %s40, %s41
    %p52 = scmp.eq.s32.totalorder %s18, 0
    %p53 = por %p51, %p52
    %p54 = scmp.ne.s32.totalorder %s40, %s41
    %p55 = scmp.eq.s32.totalorder %s19, 1
    %p56 = por %p54, %p55
    %p58 = scmp.ne.s32.totalorder %s41, %s57
    %p59 = scmp.eq.s32.totalorder %s19, 0
    %p60 = por %p58, %p59
    %s62 = sadd.s32 %s61, 1
    %p65 = scmp.eq.s32.totalorder %s13, 1
    %p66 = scmp.ne.s32.totalorder %s61, %s63
    %p67 = scmp.eq.s32.totalorder %s13, 0
    %p68 = por %p66, %p67
    %p69 = scmp.ne.s32.totalorder %s61, %s63
    %p70 = scmp.eq.s32.totalorder %s18, 1
    %p71 = por %p69, %p70
    %p72 = scmp.ne.s32.totalorder %s63, %s64
    %p73 = scmp.eq.s32.totalorder %s18, 0
    %p74 = por %p72, %p73
    %p75 = scmp.ne.s32.totalorder %s63, %s64
    %p76 = scmp.eq.s32.totalorder %s19, 1
    %p77 = por %p75, %p76
    %p79 = scmp.ne.s32.totalorder %s64, %s78
    %p80 = scmp.eq.s32.totalorder %s19, 0
    %p81 = por %p79, %p80
    %s83 = sadd.s32 %s82, 1
    %p86 = scmp.eq.s32.totalorder %s13, 1
    %p87 = scmp.ne.s32.totalorder %s82, %s84
    %p88 = scmp.eq.s32.totalorder %s13, 0
    %p89 = por %p87, %p88
    %p90 = scmp.ne.s32.totalorder %s82, %s84
    %p91 = scmp.eq.s32.totalorder %s18, 1
    %p92 = por %p90, %p91
    %p93 = scmp.ne.s32.totalorder %s84, %s85
    %p94 = scmp.eq.s32.totalorder %s18, 0
    %p95 = por %p93, %p94
    %p96 = scmp.ne.s32.totalorder %s84, %s85
    %p97 = scmp.eq.s32.totalorder %s19, 1
    %p98 = por %p96, %p97
    %p100 = scmp.ne.s32.totalorder %s85, %s99
    %p101 = scmp.eq.s32.totalorder %s19, 0
    %p102 = por %p100, %p101
    %s104 = sadd.s32 %s103, 1
    %p107 = scmp.eq.s32.totalorder %s13, 1
    %p108 = scmp.ne.s32.totalorder %s103, %s105
    %p109 = scmp.eq.s32.totalorder %s13, 0
    %p110 = por %p108, %p109
    %p111 = scmp.ne.s32.totalorder %s103, %s105
    %p112 = scmp.eq.s32.totalorder %s18, 1
    %p113 = por %p111, %p112
    %p114 = scmp.ne.s32.totalorder %s105, %s106
    %p115 = scmp.eq.s32.totalorder %s18, 0
    %p116 = por %p114, %p115
    %p117 = scmp.ne.s32.totalorder %s105, %s106
    %p118 = scmp.eq.s32.totalorder %s19, 1
    %p119 = por %p117, %p118
    %p121 = scmp.ne.s32.totalorder %s106, %s120
    %p122 = scmp.eq.s32.totalorder %s19, 0
    %p123 = por %p121, %p122
    %s124 = ssub.s32 %s20, %s32
    %s125 = ssub.s32 %s21, %s28
    %s126 = sor.u32 %s124, %s125
    %p127 = scmp.eq.s32.totalorder %s126, 0
    %s129 = sadd.s32 %s128, 1
    %s130 = scalar_select %p127, %s128, %s129
    %p133 = pneg %p127
    %p134 = scmp.eq.s32.totalorder %s13, 1
    %p135 = por %p133, %p134
    %p136 = scmp.ne.s32.totalorder %s128, %s131
    %p137 = scmp.eq.s32.totalorder %s13, 0
    %p138 = por %p136, %p137
    %p139 = scmp.ne.s32.totalorder %s128, %s131
    %p140 = scmp.eq.s32.totalorder %s18, 1
    %p141 = por %p139, %p140
    %p142 = scmp.ne.s32.totalorder %s131, %s132
    %p143 = scmp.eq.s32.totalorder %s18, 0
    %p144 = por %p142, %p143
    %p145 = scmp.ne.s32.totalorder %s131, %s132
    %p146 = scmp.eq.s32.totalorder %s19, 1
    %p147 = por %p145, %p146
    %p149 = scmp.ne.s32.totalorder %s132, %s148
    %p150 = scmp.eq.s32.totalorder %s19, 0
    %p151 = por %p149, %p150
    %s152 = ssub.s32 %s20, %s32
    %s153 = ssub.s32 %s21, %s28
    %s154 = sor.u32 %s152, %s153
    %p155 = scmp.eq.s32.totalorder %s154, 0
    %s157 = sadd.s32 %s156, 1
    %s158 = scalar_select %p155, %s156, %s157
    %p161 = pneg %p155
    %p162 = scmp.eq.s32.totalorder %s13, 1
    %p163 = por %p161, %p162
    %p164 = scmp.ne.s32.totalorder %s156, %s159
    %p165 = scmp.eq.s32.totalorder %s13, 0
    %p166 = por %p164, %p165
    %p167 = scmp.ne.s32.totalorder %s156, %s159
    %p168 = scmp.eq.s32.totalorder %s18, 1
    %p169 = por %p167, %p168
    %p170 = scmp.ne.s32.totalorder %s159, %s160
    %p171 = scmp.eq.s32.totalorder %s18, 0
    %p172 = por %p170, %p171
    %p173 = scmp.ne.s32.totalorder %s159, %s160
    %p174 = scmp.eq.s32.totalorder %s19, 1
    %p175 = por %p173, %p174
    %p177 = scmp.ne.s32.totalorder %s160, %s176
    %p178 = scmp.eq.s32.totalorder %s19, 0
    %p179 = por %p177, %p178
    %s180 = ssub.s32 %s20, %s32
    %s181 = ssub.s32 %s21, %s28
    %s182 = sor.u32 %s180, %s181
    %p183 = scmp.eq.s32.totalorder %s182, 0
    %s185 = sadd.s32 %s184, 1
    %s186 = scalar_select %p183, %s184, %s185
    %p189 = pneg %p183
    %p190 = scmp.eq.s32.totalorder %s13, 1
    %p191 = por %p189, %p190
    %p192 = scmp.ne.s32.totalorder %s184, %s187
    %p193 = scmp.eq.s32.totalorder %s13, 0
    %p194 = por %p192, %p193
    %p195 = scmp.ne.s32.totalorder %s184, %s187
    %p196 = scmp.eq.s32.totalorder %s18, 1
    %p197 = por %p195, %p196
    %p198 = scmp.ne.s32.totalorder %s187, %s188
    %p199 = scmp.eq.s32.totalorder %s18, 0
    %p200 = por %p198, %p199
    %p201 = scmp.ne.s32.totalorder %s187, %s188
    %p202 = scmp.eq.s32.totalorder %s19, 1
    %p203 = por %p201, %p202
    %p205 = scmp.ne.s32.totalorder %s188, %s204
    %p206 = scmp.eq.s32.totalorder %s19, 0
    %p207 = por %p205, %p206
    %p208 = scmp.le.s32.totalorder 1, %s13
    %p209 = scmp.lt.s32.totalorder %s13, 3
    %p210 = pnand %p208, %p209
    %p211 = pneg %p210
    // Predicated region
    $region9: #{multihead_attention.3} parent=5 // pred_check
      _
    $region10: #{multihead_attention.3} parent=5 // pred_check_branch
      %213 = sbr.rel (%p210) target = $region12
    $region11: #{multihead_attention.3} parent=5 // pred_region
      %s214 = ssub.s32 %s13, 1
      // Predicated region
      $region13: #{multihead_attention.3} parent=11 // pred_check
        %p215 = pneg %p74
      $region14: #{multihead_attention.3} parent=11 // pred_check_branch
        %217 = sbr.rel (%p215) target = $region16
      $region15: #{multihead_attention.3} parent=11 // pred_region
        _
      $region16: #{multihead_attention.3} parent=11 // pred_fallthru
        _
      // Predicated region
      $region17: #{multihead_attention.3} parent=11 // pred_check
        %p218 = pneg %p95
      $region18: #{multihead_attention.3} parent=11 // pred_check_branch
        %220 = sbr.rel (%p218) target = $region20
      $region19: #{multihead_attention.3} parent=11 // pred_region
        _
      $region20: #{multihead_attention.3} parent=11 // pred_fallthru
        _
      // Predicated region
      $region21: #{multihead_attention.3} parent=11 // pred_check
        %p221 = pneg %p116
      $region22: #{multihead_attention.3} parent=11 // pred_check_branch
        %223 = sbr.rel (%p221) target = $region24
      $region23: #{multihead_attention.3} parent=11 // pred_region
        _
      $region24: #{multihead_attention.3} parent=11 // pred_fallthru
        _
    $region12: #{multihead_attention.3} parent=5 // pred_fallthru
      _
    %p224 = scmp.lt.s32.totalorder %s13, 2
    // Predicated region
    $region25: #{multihead_attention.3} parent=5 // pred_check
      %p225 = pneg %p224
    $region26: #{multihead_attention.3} parent=5 // pred_check_branch
      %227 = sbr.rel (%p225) target = $region28
    $region27: #{multihead_attention.3} parent=5 // pred_region
      // Predicated region
      $region29: #{multihead_attention.3} parent=27 // pred_check
        %p228 = pneg %p47
      $region30: #{multihead_attention.3} parent=27 // pred_check_branch
        %230 = sbr.rel (%p228) target = $region32
      $region31: #{multihead_attention.3} parent=27 // pred_region
        %p231 = scmp.lt.s32.totalorder %s20, 1
        %s232 = scalar_select %p231, %s20, 1
        %p233 = scmp.lt.s32.totalorder %s21, 0
        %s234 = scalar_select %p233, %s21, 0
        %s235 = sadd.s32 %s234, %s232
        %s236 = smul.addr %s235, 8
        %s237 = scalar_lea.vmem %s0, %s236
      $region32: #{multihead_attention.3} parent=27 // pred_fallthru
        _
    $region28: #{multihead_attention.3} parent=5 // pred_fallthru
      _
    %p238 = scmp.le.s32.totalorder 1, %s13
    %p239 = scmp.lt.s32.totalorder %s13, 3
    %p240 = pnand %p238, %p239
    %p241 = pneg %p240
    // Predicated region
    $region33: #{multihead_attention.3} parent=5 // pred_check
      _
    $region34: #{multihead_attention.3} parent=5 // pred_check_branch
      %243 = sbr.rel (%p240) target = $region36
    $region35: #{multihead_attention.3} parent=5 // pred_region
      %s244 = ssub.s32 %s13, 1
      %p245 = scmp.lt.s32.totalorder %s22, 1
      %s246 = scalar_select %p245, %s22, 1
      %p247 = scmp.lt.s32.totalorder %s23, 0
      %s248 = scalar_select %p247, %s23, 0
      %s249 = sadd.s32 %s248, %s246
      %s250 = smul.addr %s249, 8
      %s251 = scalar_lea.vmem %s0, %s250
      %p252 = pneg %p53
      %p253 = pneg %p50
      %p254 = pneg %p74
      %p255 = pneg %p71
      %p256 = pneg %p95
      %p257 = pneg %p92
      %p258 = pneg %p116
      %p259 = pneg %p113
      %p260 = pneg %p144
      %p261 = pneg %p141
      %p262 = scmp.lt.s32.totalorder %s22, 1
      %s263 = scalar_select %p262, %s22, 1
      %p264 = scmp.lt.s32.totalorder %s23, 0
      %s265 = scalar_select %p264, %s23, 0
      %s266 = sadd.s32 %s265, %s263
      %s267 = smul.addr %s266, 4
      %s268 = scalar_lea.vmem %s4, %s267
      %p269 = pneg %p172
      %p270 = pneg %p169
      %p271 = scmp.lt.s32.totalorder %s22, 1
      %s272 = scalar_select %p271, %s22, 1
      %p273 = scmp.lt.s32.totalorder %s23, 0
      %s274 = scalar_select %p273, %s23, 0
      %s275 = sadd.s32 %s274, %s272
      %s276 = smul.addr %s275, 4
      %s277 = scalar_lea.vmem %s5, %s276
      %p278 = pneg %p200
      %p279 = pneg %p197
      %p280 = scmp.lt.s32.totalorder %s22, 1
      %s281 = scalar_select %p280, %s22, 1
      %p282 = scmp.lt.s32.totalorder %s23, 0
      %s283 = scalar_select %p282, %s23, 0
      %s284 = sadd.s32 %s283, %s281
      %s285 = smul.addr %s284, 4
      %s286 = scalar_lea.vmem %s6, %s285
      %p287 = scmp.lt.s32.totalorder %s22, 1
      %s288 = scalar_select %p287, %s22, 1
      %p289 = scmp.lt.s32.totalorder %s23, 0
      %s290 = scalar_select %p289, %s23, 0
      %s291 = sadd.s32 %s290, %s288
      %s292 = smul.addr %s291, 8
      %s293 = scalar_lea.vmem %s0, %s292
      %p294 = scmp.lt.s32.totalorder %s22, 1
      %s295 = scalar_select %p294, %s22, 1
      %p296 = scmp.lt.s32.totalorder %s23, 0
      %s297 = scalar_select %p296, %s23, 0
      %s298 = sadd.s32 %s297, %s295
      %s299 = smul.addr %s298, 4
      %s300 = scalar_lea.vmem %s4, %s299
      %p301 = scmp.lt.s32.totalorder %s22, 1
      %s302 = scalar_select %p301, %s22, 1
      %p303 = scmp.lt.s32.totalorder %s23, 0
      %s304 = scalar_select %p303, %s23, 0
      %s305 = sadd.s32 %s304, %s302
      %s306 = smul.addr %s305, 4
      %s307 = scalar_lea.vmem %s5, %s306
      %p308 = scmp.lt.s32.totalorder %s22, 1
      %s309 = scalar_select %p308, %s22, 1
      %p310 = scmp.lt.s32.totalorder %s23, 0
      %s311 = scalar_select %p310, %s23, 0
      %s312 = sadd.s32 %s311, %s309
      %s313 = smul.addr %s312, 4
      %s314 = scalar_lea.vmem %s6, %s313
      %v316 = vld [vmem:[%s293] sm:$0xff]
      %v317 = vpack.c.bf16 %v316, %v316
      %v318 = vld [vmem:[%s1] sm:$0xf]
      %v319 = vld [vmem:[%s1 + $0x4] sm:$0xf]
      %v320 = vld [vmem:[%s1 + $0x8] sm:$0xf]
      %v321 = vld [vmem:[%s1 + $0xc] sm:$0xf]
      %v326 = vunpack.c.l.b16 %v318
      %v327 = vunpack.c.l.b16 %v319
      %v328 = vunpack.c.l.b16 %v320
      %v329 = vunpack.c.l.b16 %v321
      %v330 = vpack.c.b16 %v327, %v326
      %v331 = vpack.c.b16 %v329, %v328
      %vm334 = vcmask 261120
      %v336 = vsel %vm334, %v317, 0
      %338 = vmatprep.subr.bf16.mxu0 0
      %339 = vmatpush1.bf16.msra.mxu0 0
      %340 = vmatprep.subr.bf16.mxu0 0
      %341 = vmatpush1.bf16.msra.mxu0 0
      %342 = vmatprep.subr.bf16.mxu0 0
      %343 = vmatpush1.bf16.msra.mxu0 0
      %344 = vmatprep.subr.bf16.mxu0 0
      %345 = vmatpush1.bf16.msra.mxu0 0
      %346 = vmatprep.subr.bf16.mxu0 0
      %347 = vmatpush1.bf16.msra.mxu0 0
      %348 = vmatprep.subr.bf16.mxu0 0
      %349 = vmatpush1.bf16.msra.mxu0 0
      %350 = vmatprep.subr.bf16.mxu0 0
      %351 = vmatpush1.bf16.msra.mxu0 %v331
      %352 = vmatprep.subr.bf16.mxu0 0
      %353 = vmatpush1.bf16.msra.mxu0 %v330
      %354 = vmatprep.subr.bf16.mxu0 0
      %355 = vmatpush2.bf16.msra.mxu0 0
      %356 = vmatprep.subr.bf16.mxu0 0
      %357 = vmatpush2.bf16.msra.mxu0 0
      %358 = vmatprep.subr.bf16.mxu0 0
      %359 = vmatpush2.bf16.msra.mxu0 0
      %360 = vmatprep.subr.bf16.mxu0 0
      %361 = vmatpush2.bf16.msra.mxu0 0
      %362 = vmatprep.subr.bf16.mxu0 0
      %363 = vmatpush2.bf16.msra.mxu0 0
      %364 = vmatprep.subr.bf16.mxu0 0
      %365 = vmatpush2.bf16.msra.mxu0 0
      %366 = vmatprep.subr.bf16.mxu0 0
      %367 = vmatpush2.bf16.msra.mxu0 0
      %368 = vmatprep.subr.bf16.mxu0 0
      %369 = vmatpush2.bf16.msra.mxu0 0
      %370 = vmatprep.mubr.bf16.mxu0 0
      %371 = vmatmul.mubr.bf16.gmra.mxu0 %v336
      %v372 = vpop.f32.mrf.mxu0
      %v373 = vadd.f32 0.0, %v372
      %v374 = vpop.f32.mrf.mxu0
      %v375 = vpop.f32.mrf.mxu0
      %v376 = vpop.f32.mrf.mxu0
      %377 = vdwg.mxu0
      %v378 = vpack.c.bf16 %v373, %v373
      %vm379 = vcmask 257024
      %380 = vst.msk [vmem:[%s300] sm:$0xf] %vm379, %v378
      %v381 = vld [vmem:[%s2] sm:$0xf]
      %v382 = vld [vmem:[%s2 + $0x4] sm:$0xf]
      %v383 = vld [vmem:[%s2 + $0x8] sm:$0xf]
      %v384 = vld [vmem:[%s2 + $0xc] sm:$0xf]
      %v389 = vunpack.c.l.b16 %v381
      %v390 = vunpack.c.l.b16 %v382
      %v391 = vunpack.c.l.b16 %v383
      %v392 = vunpack.c.l.b16 %v384
      %v393 = vpack.c.b16 %v390, %v389
      %v394 = vpack.c.b16 %v392, %v391
      %397 = vmatprep.subr.bf16.mxu0 0
      %398 = vmatpush1.bf16.msra.mxu0 0
      %399 = vmatprep.subr.bf16.mxu0 0
      %400 = vmatpush1.bf16.msra.mxu0 0
      %401 = vmatprep.subr.bf16.mxu0 0
      %402 = vmatpush1.bf16.msra.mxu0 0
      %403 = vmatprep.subr.bf16.mxu0 0
      %404 = vmatpush1.bf16.msra.mxu0 0
      %405 = vmatprep.subr.bf16.mxu0 0
      %406 = vmatpush1.bf16.msra.mxu0 0
      %407 = vmatprep.subr.bf16.mxu0 0
      %408 = vmatpush1.bf16.msra.mxu0 0
      %409 = vmatprep.subr.bf16.mxu0 0
      %410 = vmatpush1.bf16.msra.mxu0 %v394
      %411 = vmatprep.subr.bf16.mxu0 0
      %412 = vmatpush1.bf16.msra.mxu0 %v393
      %413 = vmatprep.subr.bf16.mxu0 0
      %414 = vmatpush2.bf16.msra.mxu0 0
      %415 = vmatprep.subr.bf16.mxu0 0
      %416 = vmatpush2.bf16.msra.mxu0 0
      %417 = vmatprep.subr.bf16.mxu0 0
      %418 = vmatpush2.bf16.msra.mxu0 0
      %419 = vmatprep.subr.bf16.mxu0 0
      %420 = vmatpush2.bf16.msra.mxu0 0
      %421 = vmatprep.subr.bf16.mxu0 0
      %422 = vmatpush2.bf16.msra.mxu0 0
      %423 = vmatprep.subr.bf16.mxu0 0
      %424 = vmatpush2.bf16.msra.mxu0 0
      %425 = vmatprep.subr.bf16.mxu0 0
      %426 = vmatpush2.bf16.msra.mxu0 0
      %427 = vmatprep.subr.bf16.mxu0 0
      %428 = vmatpush2.bf16.msra.mxu0 0
      %429 = vmatprep.mubr.bf16.mxu0 0
      %430 = vmatmul.mubr.bf16.gmra.mxu0 %v336
      %v431 = vpop.f32.mrf.mxu0
      %v432 = vadd.f32 0.0, %v431
      %v433 = vpop.f32.mrf.mxu0
      %v434 = vpop.f32.mrf.mxu0
      %v435 = vpop.f32.mrf.mxu0
      %436 = vdwg.mxu0
      %v437 = vpack.c.bf16 %v432, %v432
      %438 = vst.msk [vmem:[%s307] sm:$0xf] %vm379, %v437
      %v439 = vld [vmem:[%s3] sm:$0xf]
      %v440 = vld [vmem:[%s3 + $0x4] sm:$0xf]
      %v441 = vld [vmem:[%s3 + $0x8] sm:$0xf]
      %v442 = vld [vmem:[%s3 + $0xc] sm:$0xf]
      %v447 = vunpack.c.l.b16 %v439
      %v448 = vunpack.c.l.b16 %v440
      %v449 = vunpack.c.l.b16 %v441
      %v450 = vunpack.c.l.b16 %v442
      %v451 = vpack.c.b16 %v448, %v447
      %v452 = vpack.c.b16 %v450, %v449
      %455 = vmatprep.subr.bf16.mxu0 0
      %456 = vmatpush1.bf16.msra.mxu0 0
      %457 = vmatprep.subr.bf16.mxu0 0
      %458 = vmatpush1.bf16.msra.mxu0 0
      %459 = vmatprep.subr.bf16.mxu0 0
      %460 = vmatpush1.bf16.msra.mxu0 0
      %461 = vmatprep.subr.bf16.mxu0 0
      %462 = vmatpush1.bf16.msra.mxu0 0
      %463 = vmatprep.subr.bf16.mxu0 0
      %464 = vmatpush1.bf16.msra.mxu0 0
      %465 = vmatprep.subr.bf16.mxu0 0
      %466 = vmatpush1.bf16.msra.mxu0 0
      %467 = vmatprep.subr.bf16.mxu0 0
      %468 = vmatpush1.bf16.msra.mxu0 %v452
      %469 = vmatprep.subr.bf16.mxu0 0
      %470 = vmatpush1.bf16.msra.mxu0 %v451
      %471 = vmatprep.subr.bf16.mxu0 0
      %472 = vmatpush2.bf16.msra.mxu0 0
      %473 = vmatprep.subr.bf16.mxu0 0
      %474 = vmatpush2.bf16.msra.mxu0 0
      %475 = vmatprep.subr.bf16.mxu0 0
      %476 = vmatpush2.bf16.msra.mxu0 0
      %477 = vmatprep.subr.bf16.mxu0 0
      %478 = vmatpush2.bf16.msra.mxu0 0
      %479 = vmatprep.subr.bf16.mxu0 0
      %480 = vmatpush2.bf16.msra.mxu0 0
      %481 = vmatprep.subr.bf16.mxu0 0
      %482 = vmatpush2.bf16.msra.mxu0 0
      %483 = vmatprep.subr.bf16.mxu0 0
      %484 = vmatpush2.bf16.msra.mxu0 0
      %485 = vmatprep.subr.bf16.mxu0 0
      %486 = vmatpush2.bf16.msra.mxu0 0
      %487 = vmatprep.mubr.bf16.mxu0 0
      %488 = vmatmul.mubr.bf16.gmra.mxu0 %v336
      %v489 = vpop.f32.mrf.mxu0
      %v490 = vadd.f32 0.0, %v489
      %v491 = vpop.f32.mrf.mxu0
      %v492 = vpop.f32.mrf.mxu0
      %v493 = vpop.f32.mrf.mxu0
      %494 = vdwg.mxu0
      %v495 = vpack.c.bf16 %v490, %v490
      %496 = vst.msk [vmem:[%s314] sm:$0xf] %vm379, %v495
      %p497 = scmp.lt.s32.totalorder %s22, 1
      %s498 = scalar_select %p497, %s22, 1
      %p499 = scmp.lt.s32.totalorder %s23, 0
      %s500 = scalar_select %p499, %s23, 0
      %s501 = sadd.s32 %s500, %s498
      %s502 = smul.addr %s501, 4
      %s503 = scalar_lea.vmem %s4, %s502
      %p504 = scmp.lt.s32.totalorder %s22, 1
      %s505 = scalar_select %p504, %s22, 1
      %p506 = scmp.lt.s32.totalorder %s23, 0
      %s507 = scalar_select %p506, %s23, 0
      %s508 = sadd.s32 %s507, %s505
      %s509 = smul.addr %s508, 4
      %s510 = scalar_lea.vmem %s5, %s509
      %p511 = scmp.lt.s32.totalorder %s22, 1
      %s512 = scalar_select %p511, %s22, 1
      %p513 = scmp.lt.s32.totalorder %s23, 0
      %s514 = scalar_select %p513, %s23, 0
      %s515 = sadd.s32 %s514, %s512
      %s516 = smul.addr %s515, 4
      %s517 = scalar_lea.vmem %s6, %s516
      // Predicated region
      $region37: #{multihead_attention.3} parent=35 // pred_check
        %p518 = pneg %p141
      $region38: #{multihead_attention.3} parent=35 // pred_check_branch
        %520 = sbr.rel (%p518) target = $region40
      $region39: #{multihead_attention.3} parent=35 // pred_region
        _
      $region40: #{multihead_attention.3} parent=35 // pred_fallthru
        _
      // Predicated region
      $region41: #{multihead_attention.3} parent=35 // pred_check
        %p521 = pneg %p169
      $region42: #{multihead_attention.3} parent=35 // pred_check_branch
        %523 = sbr.rel (%p521) target = $region44
      $region43: #{multihead_attention.3} parent=35 // pred_region
        _
      $region44: #{multihead_attention.3} parent=35 // pred_fallthru
        _
      // Predicated region
      $region45: #{multihead_attention.3} parent=35 // pred_check
        %p524 = pneg %p197
      $region46: #{multihead_attention.3} parent=35 // pred_check_branch
        %526 = sbr.rel (%p524) target = $region48
      $region47: #{multihead_attention.3} parent=35 // pred_region
        _
      $region48: #{multihead_attention.3} parent=35 // pred_fallthru
        _
    $region36: #{multihead_attention.3} parent=5 // pred_fallthru
      _
    %p527 = scmp.le.s32.totalorder 2, %s13
    // Predicated region
    $region49: #{multihead_attention.3} parent=5 // pred_check
      %p528 = pneg %p527
    $region50: #{multihead_attention.3} parent=5 // pred_check_branch
      %530 = sbr.rel (%p528) target = $region52
    $region51: #{multihead_attention.3} parent=5 // pred_region
      %s531 = ssub.s32 %s13, 2
      // Predicated region
      $region53: #{multihead_attention.3} parent=51 // pred_check
        %p532 = pneg %p147
      $region54: #{multihead_attention.3} parent=51 // pred_check_branch
        %534 = sbr.rel (%p532) target = $region56
      $region55: #{multihead_attention.3} parent=51 // pred_region
        %p535 = scmp.lt.s32.totalorder %s24, 1
        %s536 = scalar_select %p535, %s24, 1
        %p537 = scmp.lt.s32.totalorder %s25, 0
        %s538 = scalar_select %p537, %s25, 0
        %s539 = sadd.s32 %s538, %s536
        %s540 = smul.addr %s539, 4
        %s541 = scalar_lea.vmem %s4, %s540
      $region56: #{multihead_attention.3} parent=51 // pred_fallthru
        _
      // Predicated region
      $region57: #{multihead_attention.3} parent=51 // pred_check
        %p542 = pneg %p175
      $region58: #{multihead_attention.3} parent=51 // pred_check_branch
        %544 = sbr.rel (%p542) target = $region60
      $region59: #{multihead_attention.3} parent=51 // pred_region
        %p545 = scmp.lt.s32.totalorder %s24, 1
        %s546 = scalar_select %p545, %s24, 1
        %p547 = scmp.lt.s32.totalorder %s25, 0
        %s548 = scalar_select %p547, %s25, 0
        %s549 = sadd.s32 %s548, %s546
        %s550 = smul.addr %s549, 4
        %s551 = scalar_lea.vmem %s5, %s550
      $region60: #{multihead_attention.3} parent=51 // pred_fallthru
        _
      // Predicated region
      $region61: #{multihead_attention.3} parent=51 // pred_check
        %p552 = pneg %p203
      $region62: #{multihead_attention.3} parent=51 // pred_check_branch
        %554 = sbr.rel (%p552) target = $region64
      $region63: #{multihead_attention.3} parent=51 // pred_region
        %p555 = scmp.lt.s32.totalorder %s24, 1
        %s556 = scalar_select %p555, %s24, 1
        %p557 = scmp.lt.s32.totalorder %s25, 0
        %s558 = scalar_select %p557, %s25, 0
        %s559 = sadd.s32 %s558, %s556
        %s560 = smul.addr %s559, 4
        %s561 = scalar_lea.vmem %s6, %s560
      $region64: #{multihead_attention.3} parent=51 // pred_fallthru
        _
    $region52: #{multihead_attention.3} parent=5 // pred_fallthru
      _
  $region6: #{multihead_attention.3} parent=0 // loop_footer
    %s17 = sadd.s32 1, %s13
  $region7: #{multihead_attention.3} parent=0 // loop_footer_branch
    %12 = sbr.rel target = $region3
  $region8: #{multihead_attention.3} parent=0 // loop_exit
    _

// kernel: multihead_attention.5
$region0: #{multihead_attention.5}
  #allocation0 [shape = 'u32[]', space=smem, size = 0x4, offset = 0x4, fixed_abs, tag = 'smem constant byte address 0x4 - core index']
  #allocation1 [shape = 'u32[144,128]{1,0:T(1,128)}', space=vmem, size = 0x12000, scoped, tag = 'internal scratch']
  %s0 = inlined_call_operand.vmem [shape: bf16[2,8,32], index: 0, kind: input, shape index: {}]
  %s1 = inlined_call_operand.vmem [shape: bf16[32,32], index: 1, kind: input, shape index: {}]
  %s2 = inlined_call_operand.vmem [shape: f32[1,32], index: 2, kind: input, shape index: {}]
  %s3 = inlined_call_operand.hbm [shape: f32[2,8,32], index: 3, kind: output, shape index: {}]
  %s4 = sld [smem:[#allocation0]]
  $region45: #{multihead_attention.5} parent=0
    _
  %s6 = ssub.s32 1, %s4
  %s7 = scalar_select 0, %s6, %s4
  $region1: #{multihead_attention.5} parent=0
    #allocation2 [shape = 'u8[8192]{0}', space=vmem, size = 0x2000, scoped, tag = 'output window, operand 0']
    #allocation3 [shape = 's32[2]{0}', space=sflag, size = 0x8, scoped, tag = 'scoped memory for multihead_attention.5']
    %8 = vsyncpa [#allocation3], 0
    %s9 = scalar_lea.sflag [#allocation3], 1
    %10 = vsyncpa %s9, 0
    loop: start=0, step=1, limit=4
    $region2: #{multihead_attention.5} parent=1 // loop_pre_header
      _
    $region3: #{multihead_attention.5} parent=1 // loop_header
      %s12 = sphi 0, %s16
      %p13 = scmp.ge.s32.totalorder %s12, 4
      %s19 = sphi 0, %s31
      %s20 = sphi 0, %s27
      %s21 = sphi 0, %s19
      %s22 = sphi 0, %s20
      %s23 = sphi 0, %s21
      %s24 = sphi 0, %s22
      %s36 = sphi 0, %s38
      %s39 = sphi 0, %s36
      %s40 = sphi 0, %s39
      %s56 = sphi 0, %s40
      %s60 = sphi 0, %s60
      %s62 = sphi 0, %s60
      %s63 = sphi 0, %s62
      %s77 = sphi 0, %s63
      %s81 = sphi 0, %s81
      %s83 = sphi 0, %s81
      %s84 = sphi 0, %s83
      %s98 = sphi 0, %s84
      %s106 = sphi 0, %s108
      %s109 = sphi 0, %s106
      %s110 = sphi 0, %s109
      %s126 = sphi 0, %s110
    $region4: #{multihead_attention.5} parent=1 // loop_header_branch
      %15 = sbr.rel (%p13) target = $region8
    $region5: #{multihead_attention.5} parent=1 // loop_body
      %s17 = ssub.s32 %s12, 1
      %s18 = ssub.s32 %s12, 2
      %s25 = sadd.s32 1, %s20
      %p26 = scmp.ge.s32.totalorder %s25, 1
      %s27 = scalar_select %p26, 0, %s25
      %s28 = sadd.s32 1, %s19
      %s29 = scalar_select %p26, %s28, %s19
      %p30 = scmp.ge.s32.totalorder %s29, 2
      %s31 = scalar_select %p30, 0, %s29
      %s32 = ssub.s32 %s19, %s31
      %s33 = ssub.s32 %s20, %s27
      %s34 = sor.u32 %s32, %s33
      %p35 = scmp.eq.s32.totalorder %s34, 0
      %s37 = sadd.s32 %s36, 1
      %s38 = scalar_select %p35, %s36, %s37
      %p41 = pneg %p35
      %p42 = scmp.eq.s32.totalorder %s12, 1
      %p43 = por %p41, %p42
      %p44 = scmp.ne.s32.totalorder %s36, %s39
      %p45 = scmp.eq.s32.totalorder %s12, 0
      %p46 = por %p44, %p45
      %p47 = scmp.ne.s32.totalorder %s36, %s39
      %p48 = scmp.eq.s32.totalorder %s17, 1
      %p49 = por %p47, %p48
      %p50 = scmp.ne.s32.totalorder %s39, %s40
      %p51 = scmp.eq.s32.totalorder %s17, 0
      %p52 = por %p50, %p51
      %p53 = scmp.ne.s32.totalorder %s39, %s40
      %p54 = scmp.eq.s32.totalorder %s18, 1
      %p55 = por %p53, %p54
      %p57 = scmp.ne.s32.totalorder %s40, %s56
      %p58 = scmp.eq.s32.totalorder %s18, 0
      %p59 = por %p57, %p58
      %s61 = sadd.s32 %s60, 1
      %p64 = scmp.eq.s32.totalorder %s12, 1
      %p65 = scmp.ne.s32.totalorder %s60, %s62
      %p66 = scmp.eq.s32.totalorder %s12, 0
      %p67 = por %p65, %p66
      %p68 = scmp.ne.s32.totalorder %s60, %s62
      %p69 = scmp.eq.s32.totalorder %s17, 1
      %p70 = por %p68, %p69
      %p71 = scmp.ne.s32.totalorder %s62, %s63
      %p72 = scmp.eq.s32.totalorder %s17, 0
      %p73 = por %p71, %p72
      %p74 = scmp.ne.s32.totalorder %s62, %s63
      %p75 = scmp.eq.s32.totalorder %s18, 1
      %p76 = por %p74, %p75
      %p78 = scmp.ne.s32.totalorder %s63, %s77
      %p79 = scmp.eq.s32.totalorder %s18, 0
      %p80 = por %p78, %p79
      %s82 = sadd.s32 %s81, 1
      %p85 = scmp.eq.s32.totalorder %s12, 1
      %p86 = scmp.ne.s32.totalorder %s81, %s83
      %p87 = scmp.eq.s32.totalorder %s12, 0
      %p88 = por %p86, %p87
      %p89 = scmp.ne.s32.totalorder %s81, %s83
      %p90 = scmp.eq.s32.totalorder %s17, 1
      %p91 = por %p89, %p90
      %p92 = scmp.ne.s32.totalorder %s83, %s84
      %p93 = scmp.eq.s32.totalorder %s17, 0
      %p94 = por %p92, %p93
      %p95 = scmp.ne.s32.totalorder %s83, %s84
      %p96 = scmp.eq.s32.totalorder %s18, 1
      %p97 = por %p95, %p96
      %p99 = scmp.ne.s32.totalorder %s84, %s98
      %p100 = scmp.eq.s32.totalorder %s18, 0
      %p101 = por %p99, %p100
      %s102 = ssub.s32 %s19, %s31
      %s103 = ssub.s32 %s20, %s27
      %s104 = sor.u32 %s102, %s103
      %p105 = scmp.eq.s32.totalorder %s104, 0
      %s107 = sadd.s32 %s106, 1
      %s108 = scalar_select %p105, %s106, %s107
      %p111 = pneg %p105
      %p112 = scmp.eq.s32.totalorder %s12, 1
      %p113 = por %p111, %p112
      %p114 = scmp.ne.s32.totalorder %s106, %s109
      %p115 = scmp.eq.s32.totalorder %s12, 0
      %p116 = por %p114, %p115
      %p117 = scmp.ne.s32.totalorder %s106, %s109
      %p118 = scmp.eq.s32.totalorder %s17, 1
      %p119 = por %p117, %p118
      %p120 = scmp.ne.s32.totalorder %s109, %s110
      %p121 = scmp.eq.s32.totalorder %s17, 0
      %p122 = por %p120, %p121
      %p123 = scmp.ne.s32.totalorder %s109, %s110
      %p124 = scmp.eq.s32.totalorder %s18, 1
      %p125 = por %p123, %p124
      %p127 = scmp.ne.s32.totalorder %s110, %s126
      %p128 = scmp.eq.s32.totalorder %s18, 0
      %p129 = por %p127, %p128
      %p130 = scmp.le.s32.totalorder 1, %s12
      %p131 = scmp.lt.s32.totalorder %s12, 3
      %p132 = pnand %p130, %p131
      %p133 = pneg %p132
      // Predicated region
      $region9: #{multihead_attention.5} parent=5 // pred_check
        _
      $region10: #{multihead_attention.5} parent=5 // pred_check_branch
        %135 = sbr.rel (%p132) target = $region12
      $region11: #{multihead_attention.5} parent=5 // pred_region
        %s136 = ssub.s32 %s12, 1
        // Predicated region
        $region13: #{multihead_attention.5} parent=11 // pred_check
          %p137 = pneg %p73
        $region14: #{multihead_attention.5} parent=11 // pred_check_branch
          %139 = sbr.rel (%p137) target = $region16
        $region15: #{multihead_attention.5} parent=11 // pred_region
          _
        $region16: #{multihead_attention.5} parent=11 // pred_fallthru
          _
        // Predicated region
        $region17: #{multihead_attention.5} parent=11 // pred_check
          %p140 = pneg %p94
        $region18: #{multihead_attention.5} parent=11 // pred_check_branch
          %142 = sbr.rel (%p140) target = $region20
        $region19: #{multihead_attention.5} parent=11 // pred_region
          _
        $region20: #{multihead_attention.5} parent=11 // pred_fallthru
          _
      $region12: #{multihead_attention.5} parent=5 // pred_fallthru
        _
      %p143 = scmp.lt.s32.totalorder %s12, 2
      // Predicated region
      $region21: #{multihead_attention.5} parent=5 // pred_check
        %p144 = pneg %p143
      $region22: #{multihead_attention.5} parent=5 // pred_check_branch
        %146 = sbr.rel (%p144) target = $region24
      $region23: #{multihead_attention.5} parent=5 // pred_region
        // Predicated region
        $region25: #{multihead_attention.5} parent=23 // pred_check
          %p147 = pneg %p46
        $region26: #{multihead_attention.5} parent=23 // pred_check_branch
          %149 = sbr.rel (%p147) target = $region28
        $region27: #{multihead_attention.5} parent=23 // pred_region
          %p150 = scmp.lt.s32.totalorder %s19, 1
          %s151 = scalar_select %p150, %s19, 1
          %p152 = scmp.lt.s32.totalorder %s20, 0
          %s153 = scalar_select %p152, %s20, 0
          %s154 = sadd.s32 %s153, %s151
          %s155 = smul.addr %s154, 4
          %s156 = scalar_lea.vmem %s0, %s155
        $region28: #{multihead_attention.5} parent=23 // pred_fallthru
          _
      $region24: #{multihead_attention.5} parent=5 // pred_fallthru
        _
      %p157 = scmp.le.s32.totalorder 1, %s12
      %p158 = scmp.lt.s32.totalorder %s12, 3
      %p159 = pnand %p157, %p158
      %p160 = pneg %p159
      // Predicated region
      $region29: #{multihead_attention.5} parent=5 // pred_check
        _
      $region30: #{multihead_attention.5} parent=5 // pred_check_branch
        %162 = sbr.rel (%p159) target = $region32
      $region31: #{multihead_attention.5} parent=5 // pred_region
        %s163 = ssub.s32 %s12, 1
        %p164 = scmp.lt.s32.totalorder %s21, 1
        %s165 = scalar_select %p164, %s21, 1
        %p166 = scmp.lt.s32.totalorder %s22, 0
        %s167 = scalar_select %p166, %s22, 0
        %s168 = sadd.s32 %s167, %s165
        %s169 = smul.addr %s168, 4
        %s170 = scalar_lea.vmem %s0, %s169
        %p171 = pneg %p52
        %p172 = pneg %p49
        %p173 = pneg %p73
        %p174 = pneg %p70
        %p175 = pneg %p94
        %p176 = pneg %p91
        %p177 = pneg %p122
        %p178 = pneg %p119
        %s179 = sand.u32 %s109, 1
        %s180 = scalar_lea.sflag [#allocation3], %s179
        %s181 = sand.u32 %s109, 1
        %s182 = smul.addr %s181, 8
        %s183 = scalar_lea.vmem [#allocation2], %s182
        %p184 = scmp.lt.s32.totalorder %s21, 1
        %s185 = scalar_select %p184, %s21, 1
        %p186 = scmp.lt.s32.totalorder %s22, 0
        %s187 = scalar_select %p186, %s22, 0
        %s188 = sadd.s32 %s187, %s185
        %s189 = smul.addr %s188, 4
        %s190 = scalar_lea.vmem %s0, %s189
        %v192 = vld [vmem:[%s190] sm:$0xf]
        %v193 = vld [vmem:[%s1] sm:$0xf]
        %v194 = vld [vmem:[%s1 + $0x4] sm:$0xf]
        %v195 = vld [vmem:[%s1 + $0x8] sm:$0xf]
        %v196 = vld [vmem:[%s1 + $0xc] sm:$0xf]
        %v197 = vld [vmem:[%s2] sm:$0x1]
        %v199 = vlaneseq
        %v200 = vshrl.u32 %v199, 7
        %v201 = vsub.s32 0, %v200
        %v202 = vrot.slane %v197, %v201
        %v208 = vunpack.c.l.b16 %v193
        %v209 = vunpack.c.l.b16 %v194
        %v210 = vunpack.c.l.b16 %v195
        %v211 = vunpack.c.l.b16 %v196
        %v212 = vpack.c.b16 %v209, %v208
        %v213 = vpack.c.b16 %v211, %v210
        %vm216 = vcmask 261120
        %v218 = vsel %vm216, %v192, 0
        %220 = vmatprep.subr.bf16.mxu0 0
        %221 = vmatpush1.bf16.msra.mxu0 0
        %222 = vmatprep.subr.bf16.mxu0 0
        %223 = vmatpush1.bf16.msra.mxu0 0
        %224 = vmatprep.subr.bf16.mxu0 0
        %225 = vmatpush1.bf16.msra.mxu0 0
        %226 = vmatprep.subr.bf16.mxu0 0
        %227 = vmatpush1.bf16.msra.mxu0 0
        %228 = vmatprep.subr.bf16.mxu0 0
        %229 = vmatpush1.bf16.msra.mxu0 0
        %230 = vmatprep.subr.bf16.mxu0 0
        %231 = vmatpush1.bf16.msra.mxu0 0
        %232 = vmatprep.subr.bf16.mxu0 0
        %233 = vmatpush1.bf16.msra.mxu0 %v213
        %234 = vmatprep.subr.bf16.mxu0 0
        %235 = vmatpush1.bf16.msra.mxu0 %v212
        %236 = vmatprep.subr.bf16.mxu0 0
        %237 = vmatpush2.bf16.msra.mxu0 0
        %238 = vmatprep.subr.bf16.mxu0 0
        %239 = vmatpush2.bf16.msra.mxu0 0
        %240 = vmatprep.subr.bf16.mxu0 0
        %241 = vmatpush2.bf16.msra.mxu0 0
        %242 = vmatprep.subr.bf16.mxu0 0
        %243 = vmatpush2.bf16.msra.mxu0 0
        %244 = vmatprep.subr.bf16.mxu0 0
        %245 = vmatpush2.bf16.msra.mxu0 0
        %246 = vmatprep.subr.bf16.mxu0 0
        %247 = vmatpush2.bf16.msra.mxu0 0
        %248 = vmatprep.subr.bf16.mxu0 0
        %249 = vmatpush2.bf16.msra.mxu0 0
        %250 = vmatprep.subr.bf16.mxu0 0
        %251 = vmatpush2.bf16.msra.mxu0 0
        %252 = vmatprep.mubr.bf16.mxu0 0
        %253 = vmatmul.mubr.bf16.gmra.mxu0 %v218
        %v254 = vpop.f32.mrf.mxu0
        %v255 = vadd.f32 %v202, %v254
        %v256 = vpop.f32.mrf.mxu0
        %v257 = vpop.f32.mrf.mxu0
        %v258 = vpop.f32.mrf.mxu0
        %259 = vdwg.mxu0
        %260 = vst.msk [vmem:[%s183] sm:$0xff] %vm216, %v255
        %s261 = sand.u32 %s109, 1
        %s262 = scalar_lea.sflag [#allocation3], %s261
        %s263 = sand.u32 %s109, 1
        %s264 = smul.addr %s263, 8
        %s265 = scalar_lea.vmem [#allocation2], %s264
        // Predicated region
        $region33: #{multihead_attention.5} parent=31 // pred_check
          %p266 = pneg %p119
        $region34: #{multihead_attention.5} parent=31 // pred_check_branch
          %268 = sbr.rel (%p266) target = $region36
        $region35: #{multihead_attention.5} parent=31 // pred_region
          %s270 = ssub.s32 128, 128
          %271 = vsyncadd %s262, %s270
          %s272 = sadd.s32 %s22, %s21
          %s273 = smul.addr %s272, 128
          %s274 = scalar_lea.hbm %s3, %s273
          %s276 = sshll.u32 %s265, 4
          %s277 = int_to_ptr.vmem [resolvable:$true] %s276
          %279 = dma.vmem_to_hbm [thread:$0]  %s277, 128, %s274, %s262
        $region36: #{multihead_attention.5} parent=31 // pred_fallthru
          _
      $region32: #{multihead_attention.5} parent=5 // pred_fallthru
        _
      %p280 = scmp.le.s32.totalorder 2, %s12
      // Predicated region
      $region37: #{multihead_attention.5} parent=5 // pred_check
        %p281 = pneg %p280
      $region38: #{multihead_attention.5} parent=5 // pred_check_branch
        %283 = sbr.rel (%p281) target = $region40
      $region39: #{multihead_attention.5} parent=5 // pred_region
        %s284 = ssub.s32 %s12, 2
        // Predicated region
        $region41: #{multihead_attention.5} parent=39 // pred_check
          %p285 = pneg %p125
        $region42: #{multihead_attention.5} parent=39 // pred_check_branch
          %287 = sbr.rel (%p285) target = $region44
        $region43: #{multihead_attention.5} parent=39 // pred_region
          %s288 = sand.u32 %s110, 1
          %s289 = scalar_lea.sflag [#allocation3], %s288
          %s290 = sand.u32 %s110, 1
          %s291 = smul.addr %s290, 8
          %s292 = scalar_lea.vmem [#allocation2], %s291
          %293 = dma.done %s289, 128
        $region44: #{multihead_attention.5} parent=39 // pred_fallthru
          _
      $region40: #{multihead_attention.5} parent=5 // pred_fallthru
        _
    $region6: #{multihead_attention.5} parent=1 // loop_footer
      %s16 = sadd.s32 1, %s12
    $region7: #{multihead_attention.5} parent=1 // loop_footer_branch
      %11 = sbr.rel target = $region3
    $region8: #{multihead_attention.5} parent=1 // loop_exit
      _
    %294 = vsyncpa [#allocation3], 1
    %s295 = scalar_lea.sflag [#allocation3], 1
    %296 = vsyncpa %s295, 1

// kernel: multihead_attention.4
$region0: #{multihead_attention.4}
  #allocation0 [shape = 'u32[]', space=smem, size = 0x4, offset = 0x4, fixed_abs, tag = 'smem constant byte address 0x4 - core index']
  #allocation1 [shape = 'u32[144,128]{1,0:T(1,128)}', space=vmem, size = 0x12000, scoped, tag = 'internal scratch']
  #allocation2 [shape = 'f32[4,8,1]{2,1,0:T(8,128)}', space=vmem, size = 0x4000, scoped, tag = 'scratch operand']
  #allocation3 [shape = 'f32[4,8,1]{2,1,0:T(8,128)}', space=vmem, size = 0x4000, scoped, tag = 'scratch operand']
  #allocation4 [shape = 'f32[4,8,8]{2,1,0:T(8,128)}', space=vmem, size = 0x4000, scoped, tag = 'scratch operand']
  %s0 = inlined_call_operand.vmem [shape: bf16[2,4,8,8], index: 0, kind: input, shape index: {}]
  %s1 = inlined_call_operand.vmem [shape: bf16[2,4,8,8], index: 1, kind: input, shape index: {}]
  %s2 = inlined_call_operand.vmem [shape: bf16[2,4,8,8], index: 2, kind: input, shape index: {}]
  %s3 = inlined_call_operand.vmem [shape: bf16[2,4,8,8], index: 3, kind: output, shape index: {}]
  %s4 = sld [smem:[#allocation0]]
  $region57: #{multihead_attention.4} parent=0
    _
  %s6 = ssub.s32 1, %s4
  %s7 = scalar_select 0, %s6, %s4
  loop: start=0, step=1, limit=4
  $region2: #{multihead_attention.4} parent=0 // loop_pre_header
    _
  $region3: #{multihead_attention.4} parent=0 // loop_header
    %s9 = sphi 0, %s13
    %p10 = scmp.ge.s32.totalorder %s9, 4
    %s16 = sphi 0, %s35
    %s17 = sphi 0, %s31
    %s18 = sphi 0, %s27
    %s19 = sphi 0, %s16
    %s20 = sphi 0, %s17
    %s21 = sphi 0, %s18
    %s22 = sphi 0, %s19
    %s23 = sphi 0, %s20
    %s24 = sphi 0, %s21
    %s40 = sphi 0, %s42
    %s43 = sphi 0, %s40
    %s44 = sphi 0, %s43
    %s60 = sphi 0, %s44
    %s72 = sphi 0, %s74
    %s75 = sphi 0, %s72
    %s76 = sphi 0, %s75
    %s92 = sphi 0, %s76
    %s104 = sphi 0, %s106
    %s107 = sphi 0, %s104
    %s108 = sphi 0, %s107
    %s124 = sphi 0, %s108
    %s132 = sphi 0, %s134
    %s135 = sphi 0, %s132
    %s136 = sphi 0, %s135
    %s152 = sphi 0, %s136
  $region4: #{multihead_attention.4} parent=0 // loop_header_branch
    %12 = sbr.rel (%p10) target = $region8
  $region5: #{multihead_attention.4} parent=0 // loop_body
    %s14 = ssub.s32 %s9, 1
    %s15 = ssub.s32 %s9, 2
    %s25 = sadd.s32 1, %s18
    %p26 = scmp.ge.s32.totalorder %s25, 1
    %s27 = scalar_select %p26, 0, %s25
    %s28 = sadd.s32 1, %s17
    %s29 = scalar_select %p26, %s28, %s17
    %p30 = scmp.ge.s32.totalorder %s29, 1
    %s31 = scalar_select %p30, 0, %s29
    %s32 = sadd.s32 1, %s16
    %s33 = scalar_select %p30, %s32, %s16
    %p34 = scmp.ge.s32.totalorder %s33, 2
    %s35 = scalar_select %p34, 0, %s33
    %s36 = ssub.s32 %s16, %s35
    %s37 = ssub.s32 %s17, %s31
    %s38 = sor.u32 %s36, %s37
    %p39 = scmp.eq.s32.totalorder %s38, 0
    %s41 = sadd.s32 %s40, 1
    %s42 = scalar_select %p39, %s40, %s41
    %p45 = pneg %p39
    %p46 = scmp.eq.s32.totalorder %s9, 1
    %p47 = por %p45, %p46
    %p48 = scmp.ne.s32.totalorder %s40, %s43
    %p49 = scmp.eq.s32.totalorder %s9, 0
    %p50 = por %p48, %p49
    %p51 = scmp.ne.s32.totalorder %s40, %s43
    %p52 = scmp.eq.s32.totalorder %s14, 1
    %p53 = por %p51, %p52
    %p54 = scmp.ne.s32.totalorder %s43, %s44
    %p55 = scmp.eq.s32.totalorder %s14, 0
    %p56 = por %p54, %p55
    %p57 = scmp.ne.s32.totalorder %s43, %s44
    %p58 = scmp.eq.s32.totalorder %s15, 1
    %p59 = por %p57, %p58
    %p61 = scmp.ne.s32.totalorder %s44, %s60
    %p62 = scmp.eq.s32.totalorder %s15, 0
    %p63 = por %p61, %p62
    %p64 = scmp.lt.s32.totalorder %s18, %s17
    %s65 = scalar_select %p64, %s18, %s17
    %p66 = scmp.lt.s32.totalorder %s27, %s31
    %s67 = scalar_select %p66, %s27, %s31
    %s68 = ssub.s32 %s16, %s35
    %s69 = ssub.s32 %s65, %s67
    %s70 = sor.u32 %s68, %s69
    %p71 = scmp.eq.s32.totalorder %s70, 0
    %s73 = sadd.s32 %s72, 1
    %s74 = scalar_select %p71, %s72, %s73
    %p77 = pneg %p71
    %p78 = scmp.eq.s32.totalorder %s9, 1
    %p79 = por %p77, %p78
    %p80 = scmp.ne.s32.totalorder %s72, %s75
    %p81 = scmp.eq.s32.totalorder %s9, 0
    %p82 = por %p80, %p81
    %p83 = scmp.ne.s32.totalorder %s72, %s75
    %p84 = scmp.eq.s32.totalorder %s14, 1
    %p85 = por %p83, %p84
    %p86 = scmp.ne.s32.totalorder %s75, %s76
    %p87 = scmp.eq.s32.totalorder %s14, 0
    %p88 = por %p86, %p87
    %p89 = scmp.ne.s32.totalorder %s75, %s76
    %p90 = scmp.eq.s32.totalorder %s15, 1
    %p91 = por %p89, %p90
    %p93 = scmp.ne.s32.totalorder %s76, %s92
    %p94 = scmp.eq.s32.totalorder %s15, 0
    %p95 = por %p93, %p94
    %p96 = scmp.lt.s32.totalorder %s18, %s17
    %s97 = scalar_select %p96, %s18, %s17
    %p98 = scmp.lt.s32.totalorder %s27, %s31
    %s99 = scalar_select %p98, %s27, %s31
    %s100 = ssub.s32 %s16, %s35
    %s101 = ssub.s32 %s97, %s99
    %s102 = sor.u32 %s100, %s101
    %p103 = scmp.eq.s32.totalorder %s102, 0
    %s105 = sadd.s32 %s104, 1
    %s106 = scalar_select %p103, %s104, %s105
    %p109 = pneg %p103
    %p110 = scmp.eq.s32.totalorder %s9, 1
    %p111 = por %p109, %p110
    %p112 = scmp.ne.s32.totalorder %s104, %s107
    %p113 = scmp.eq.s32.totalorder %s9, 0
    %p114 = por %p112, %p113
    %p115 = scmp.ne.s32.totalorder %s104, %s107
    %p116 = scmp.eq.s32.totalorder %s14, 1
    %p117 = por %p115, %p116
    %p118 = scmp.ne.s32.totalorder %s107, %s108
    %p119 = scmp.eq.s32.totalorder %s14, 0
    %p120 = por %p118, %p119
    %p121 = scmp.ne.s32.totalorder %s107, %s108
    %p122 = scmp.eq.s32.totalorder %s15, 1
    %p123 = por %p121, %p122
    %p125 = scmp.ne.s32.totalorder %s108, %s124
    %p126 = scmp.eq.s32.totalorder %s15, 0
    %p127 = por %p125, %p126
    %s128 = ssub.s32 %s16, %s35
    %s129 = ssub.s32 %s17, %s31
    %s130 = sor.u32 %s128, %s129
    %p131 = scmp.eq.s32.totalorder %s130, 0
    %s133 = sadd.s32 %s132, 1
    %s134 = scalar_select %p131, %s132, %s133
    %p137 = pneg %p131
    %p138 = scmp.eq.s32.totalorder %s9, 1
    %p139 = por %p137, %p138
    %p140 = scmp.ne.s32.totalorder %s132, %s135
    %p141 = scmp.eq.s32.totalorder %s9, 0
    %p142 = por %p140, %p141
    %p143 = scmp.ne.s32.totalorder %s132, %s135
    %p144 = scmp.eq.s32.totalorder %s14, 1
    %p145 = por %p143, %p144
    %p146 = scmp.ne.s32.totalorder %s135, %s136
    %p147 = scmp.eq.s32.totalorder %s14, 0
    %p148 = por %p146, %p147
    %p149 = scmp.ne.s32.totalorder %s135, %s136
    %p150 = scmp.eq.s32.totalorder %s15, 1
    %p151 = por %p149, %p150
    %p153 = scmp.ne.s32.totalorder %s136, %s152
    %p154 = scmp.eq.s32.totalorder %s15, 0
    %p155 = por %p153, %p154
    %p156 = scmp.le.s32.totalorder 1, %s9
    %p157 = scmp.lt.s32.totalorder %s9, 3
    %p158 = pnand %p156, %p157
    %p159 = pneg %p158
    // Predicated region
    $region9: #{multihead_attention.4} parent=5 // pred_check
      _
    $region10: #{multihead_attention.4} parent=5 // pred_check_branch
      %161 = sbr.rel (%p158) target = $region12
    $region11: #{multihead_attention.4} parent=5 // pred_region
      %s162 = ssub.s32 %s9, 1
    $region12: #{multihead_attention.4} parent=5 // pred_fallthru
      _
    %p163 = scmp.lt.s32.totalorder %s9, 2
    // Predicated region
    $region13: #{multihead_attention.4} parent=5 // pred_check
      %p164 = pneg %p163
    $region14: #{multihead_attention.4} parent=5 // pred_check_branch
      %166 = sbr.rel (%p164) target = $region16
    $region15: #{multihead_attention.4} parent=5 // pred_region
      // Predicated region
      $region17: #{multihead_attention.4} parent=15 // pred_check
        %p167 = pneg %p50
      $region18: #{multihead_attention.4} parent=15 // pred_check_branch
        %169 = sbr.rel (%p167) target = $region20
      $region19: #{multihead_attention.4} parent=15 // pred_region
        %p170 = scmp.lt.s32.totalorder %s16, 1
        %s171 = scalar_select %p170, %s16, 1
        %p172 = scmp.lt.s32.totalorder %s17, 0
        %s173 = scalar_select %p172, %s17, 0
        %s174 = smul.addr %s171, 4
        %s175 = sadd.s32 %s173, %s174
        %s176 = smul.addr %s175, 4
        %s177 = scalar_lea.vmem %s0, %s176
      $region20: #{multihead_attention.4} parent=15 // pred_fallthru
        _
      // Predicated region
      $region21: #{multihead_attention.4} parent=15 // pred_check
        %p178 = pneg %p82
      $region22: #{multihead_attention.4} parent=15 // pred_check_branch
        %180 = sbr.rel (%p178) target = $region24
      $region23: #{multihead_attention.4} parent=15 // pred_region
        %p181 = scmp.lt.s32.totalorder %s18, %s17
        %s182 = scalar_select %p181, %s18, %s17
        %p183 = scmp.lt.s32.totalorder %s16, 1
        %s184 = scalar_select %p183, %s16, 1
        %p185 = scmp.lt.s32.totalorder %s182, 0
        %s186 = scalar_select %p185, %s182, 0
        %s187 = smul.addr %s184, 4
        %s188 = sadd.s32 %s186, %s187
        %s189 = smul.addr %s188, 4
        %s190 = scalar_lea.vmem %s1, %s189
        %p191 = scmp.lt.s32.totalorder %s18, %s17
        %s192 = scalar_select %p191, %s18, %s17
      $region24: #{multihead_attention.4} parent=15 // pred_fallthru
        _
      // Predicated region
      $region25: #{multihead_attention.4} parent=15 // pred_check
        %p193 = pneg %p114
      $region26: #{multihead_attention.4} parent=15 // pred_check_branch
        %195 = sbr.rel (%p193) target = $region28
      $region27: #{multihead_attention.4} parent=15 // pred_region
        %p196 = scmp.lt.s32.totalorder %s18, %s17
        %s197 = scalar_select %p196, %s18, %s17
        %p198 = scmp.lt.s32.totalorder %s16, 1
        %s199 = scalar_select %p198, %s16, 1
        %p200 = scmp.lt.s32.totalorder %s197, 0
        %s201 = scalar_select %p200, %s197, 0
        %s202 = smul.addr %s199, 4
        %s203 = sadd.s32 %s201, %s202
        %s204 = smul.addr %s203, 4
        %s205 = scalar_lea.vmem %s2, %s204
        %p206 = scmp.lt.s32.totalorder %s18, %s17
        %s207 = scalar_select %p206, %s18, %s17
      $region28: #{multihead_attention.4} parent=15 // pred_fallthru
        _
    $region16: #{multihead_attention.4} parent=5 // pred_fallthru
      _
    %p208 = scmp.le.s32.totalorder 1, %s9
    %p209 = scmp.lt.s32.totalorder %s9, 3
    %p210 = pnand %p208, %p209
    %p211 = pneg %p210
    // Predicated region
    $region29: #{multihead_attention.4} parent=5 // pred_check
      _
    $region30: #{multihead_attention.4} parent=5 // pred_check_branch
      %213 = sbr.rel (%p210) target = $region32
    $region31: #{multihead_attention.4} parent=5 // pred_region
      %s214 = ssub.s32 %s9, 1
      %p215 = scmp.lt.s32.totalorder %s19, 1
      %s216 = scalar_select %p215, %s19, 1
      %p217 = scmp.lt.s32.totalorder %s20, 0
      %s218 = scalar_select %p217, %s20, 0
      %s219 = smul.addr %s216, 4
      %s220 = sadd.s32 %s218, %s219
      %s221 = smul.addr %s220, 4
      %s222 = scalar_lea.vmem %s0, %s221
      %p223 = pneg %p56
      %p224 = pneg %p53
      %p225 = scmp.lt.s32.totalorder %s21, %s20
      %s226 = scalar_select %p225, %s21, %s20
      %p227 = scmp.lt.s32.totalorder %s19, 1
      %s228 = scalar_select %p227, %s19, 1
      %p229 = scmp.lt.s32.totalorder %s226, 0
      %s230 = scalar_select %p229, %s226, 0
      %s231 = smul.addr %s228, 4
      %s232 = sadd.s32 %s230, %s231
      %s233 = smul.addr %s232, 4
      %s234 = scalar_lea.vmem %s1, %s233
      %p235 = pneg %p88
      %p236 = pneg %p85
      %p237 = scmp.lt.s32.totalorder %s21, %s20
      %s238 = scalar_select %p237, %s21, %s20
      %p239 = scmp.lt.s32.totalorder %s19, 1
      %s240 = scalar_select %p239, %s19, 1
      %p241 = scmp.lt.s32.totalorder %s238, 0
      %s242 = scalar_select %p241, %s238, 0
      %s243 = smul.addr %s240, 4
      %s244 = sadd.s32 %s242, %s243
      %s245 = smul.addr %s244, 4
      %s246 = scalar_lea.vmem %s2, %s245
      %p247 = pneg %p120
      %p248 = pneg %p117
      %p249 = pneg %p148
      %p250 = pneg %p145
      %p251 = scmp.lt.s32.totalorder %s19, 1
      %s252 = scalar_select %p251, %s19, 1
      %p253 = scmp.lt.s32.totalorder %s20, 0
      %s254 = scalar_select %p253, %s20, 0
      %s255 = smul.addr %s252, 4
      %s256 = sadd.s32 %s254, %s255
      %s257 = smul.addr %s256, 4
      %s258 = scalar_lea.vmem %s3, %s257
      %p259 = scmp.lt.s32.totalorder %s19, 1
      %s260 = scalar_select %p259, %s19, 1
      %p261 = scmp.lt.s32.totalorder %s20, 0
      %s262 = scalar_select %p261, %s20, 0
      %s263 = smul.addr %s260, 4
      %s264 = sadd.s32 %s262, %s263
      %s265 = smul.addr %s264, 4
      %s266 = scalar_lea.vmem %s0, %s265
      %p267 = scmp.lt.s32.totalorder %s21, %s20
      %s268 = scalar_select %p267, %s21, %s20
      %p269 = scmp.lt.s32.totalorder %s19, 1
      %s270 = scalar_select %p269, %s19, 1
      %p271 = scmp.lt.s32.totalorder %s268, 0
      %s272 = scalar_select %p271, %s268, 0
      %s273 = smul.addr %s270, 4
      %s274 = sadd.s32 %s272, %s273
      %s275 = smul.addr %s274, 4
      %s276 = scalar_lea.vmem %s1, %s275
      %p277 = scmp.lt.s32.totalorder %s21, %s20
      %s278 = scalar_select %p277, %s21, %s20
      %p279 = scmp.lt.s32.totalorder %s21, %s20
      %s280 = scalar_select %p279, %s21, %s20
      %p281 = scmp.lt.s32.totalorder %s19, 1
      %s282 = scalar_select %p281, %s19, 1
      %p283 = scmp.lt.s32.totalorder %s280, 0
      %s284 = scalar_select %p283, %s280, 0
      %s285 = smul.addr %s282, 4
      %s286 = sadd.s32 %s284, %s285
      %s287 = smul.addr %s286, 4
      %s288 = scalar_lea.vmem %s2, %s287
      %p289 = scmp.lt.s32.totalorder %s21, %s20
      %s290 = scalar_select %p289, %s21, %s20
      %p291 = scmp.lt.s32.totalorder %s19, 1
      %s292 = scalar_select %p291, %s19, 1
      %p293 = scmp.lt.s32.totalorder %s20, 0
      %s294 = scalar_select %p293, %s20, 0
      %s295 = smul.addr %s292, 4
      %s296 = sadd.s32 %s294, %s295
      %s297 = smul.addr %s296, 4
      %s298 = scalar_lea.vmem %s3, %s297
      %p300 = scmp.eq.s32.totalorder %s21, 0
      // Predicated region
      $region33: #{multihead_attention.4} parent=31 // pred_check
        %p301 = pneg %p300
      $region34: #{multihead_attention.4} parent=31 // pred_check_branch
        %303 = sbr.rel (%p301) target = $region36
      $region35: #{multihead_attention.4} parent=31 // pred_region
        %vm304 = vcmask 7168
        %305 = vst.msk [vmem:[#allocation2] sm:$0xff] %vm304, -inf
        %306 = vst.msk [vmem:[#allocation2 + $0x8] sm:$0xff] %vm304, -inf
        %307 = vst.msk [vmem:[#allocation2 + $0x10] sm:$0xff] %vm304, -inf
        %308 = vst.msk [vmem:[#allocation2 + $0x18] sm:$0xff] %vm304, -inf
        %309 = vst.msk [vmem:[#allocation3] sm:$0xff] %vm304, 0.0
        %310 = vst.msk [vmem:[#allocation3 + $0x8] sm:$0xff] %vm304, 0.0
        %311 = vst.msk [vmem:[#allocation3 + $0x10] sm:$0xff] %vm304, 0.0
        %312 = vst.msk [vmem:[#allocation3 + $0x18] sm:$0xff] %vm304, 0.0
        %vm313 = vcmask 64512
        %314 = vst.msk [vmem:[#allocation4] sm:$0xff] %vm313, 0.0
        %315 = vst.msk [vmem:[#allocation4 + $0x8] sm:$0xff] %vm313, 0.0
        %316 = vst.msk [vmem:[#allocation4 + $0x10] sm:$0xff] %vm313, 0.0
        %317 = vst.msk [vmem:[#allocation4 + $0x18] sm:$0xff] %vm313, 0.0
      $region36: #{multihead_attention.4} parent=31 // pred_fallthru
        _
      %p318 = scmp.le.s32.totalorder %s21, %s20
      // Predicated region
      $region37: #{multihead_attention.4} parent=31 // pred_check
        %p319 = pneg %p318
      $region38: #{multihead_attention.4} parent=31 // pred_check_branch
        %321 = sbr.rel (%p319) target = $region40
      $region39: #{multihead_attention.4} parent=31 // pred_region
        %v322 = vld [vmem:[%s266] sm:$0xf]
        %v323 = vld [vmem:[%s266 + $0x4] sm:$0xf]
        %v324 = vld [vmem:[%s266 + $0x8] sm:$0xf]
        %v325 = vld [vmem:[%s266 + $0xc] sm:$0xf]
        %v326 = vld [vmem:[%s276] sm:$0xf]
        %v327 = vld [vmem:[%s276 + $0x4] sm:$0xf]
        %v328 = vld [vmem:[%s276 + $0x8] sm:$0xf]
        %v329 = vld [vmem:[%s276 + $0xc] sm:$0xf]
        %v330 = vld [vmem:[%s288] sm:$0xf]
        %v331 = vld [vmem:[%s288 + $0x4] sm:$0xf]
        %v332 = vld [vmem:[%s288 + $0x8] sm:$0xf]
        %v333 = vld [vmem:[%s288 + $0xc] sm:$0xf]
        %vm334 = vcmask 64512
        %v336 = vsel %vm334, %v322, 0
        %v339 = vsel %vm334, %v326, 0
        %341 = vmatprep.subr.bf16.mxu0 0
        %342 = vmatpush1.bf16.xpose.msra.mxu0 0
        %343 = vmatprep.subr.bf16.mxu0 0
        %344 = vmatpush1.bf16.xpose.msra.mxu0 0
        %345 = vmatprep.subr.bf16.mxu0 0
        %346 = vmatpush1.bf16.xpose.msra.mxu0 0
        %347 = vmatprep.subr.bf16.mxu0 0
        %348 = vmatpush1.bf16.xpose.msra.mxu0 0
        %349 = vmatprep.subr.bf16.mxu0 0
        %350 = vmatpush1.bf16.xpose.msra.mxu0 0
        %351 = vmatprep.subr.bf16.mxu0 0
        %352 = vmatpush1.bf16.xpose.msra.mxu0 0
        %353 = vmatprep.subr.bf16.mxu0 0
        %354 = vmatpush1.bf16.xpose.msra.mxu0 0
        %355 = vmatprep.subr.bf16.mxu0 0
        %356 = vmatpush1.bf16.xpose.msra.mxu0 %v339
        %357 = vmatprep.subr.bf16.mxu0 0
        %358 = vmatpush2.bf16.xpose.msra.mxu0 0
        %359 = vmatprep.subr.bf16.mxu0 0
        %360 = vmatpush2.bf16.xpose.msra.mxu0 0
        %361 = vmatprep.subr.bf16.mxu0 0
        %362 = vmatpush2.bf16.xpose.msra.mxu0 0
        %363 = vmatprep.subr.bf16.mxu0 0
        %364 = vmatpush2.bf16.xpose.msra.mxu0 0
        %365 = vmatprep.subr.bf16.mxu0 0
        %366 = vmatpush2.bf16.xpose.msra.mxu0 0
        %367 = vmatprep.subr.bf16.mxu0 0
        %368 = vmatpush2.bf16.xpose.msra.mxu0 0
        %369 = vmatprep.subr.bf16.mxu0 0
        %370 = vmatpush2.bf16.xpose.msra.mxu0 0
        %371 = vmatprep.subr.bf16.mxu0 0
        %372 = vmatpush2.bf16.xpose.msra.mxu0 0
        %373 = vmatprep.mubr.bf16.mxu0 0
        %374 = vmatmul.mubr.bf16.gmra.mxu0 %v336
        %v375 = vpop.f32.mrf.mxu0
        %v376 = vadd.f32 0.0, %v375
        %v377 = vpop.f32.mrf.mxu0
        %v378 = vpop.f32.mrf.mxu0
        %v379 = vpop.f32.mrf.mxu0
        %380 = vdwg.mxu0
        %v382 = vsel %vm334, %v323, 0
        %v385 = vsel %vm334, %v327, 0
        %387 = vmatprep.subr.bf16.mxu0 0
        %388 = vmatpush1.bf16.xpose.msra.mxu0 0
        %389 = vmatprep.subr.bf16.mxu0 0
        %390 = vmatpush1.bf16.xpose.msra.mxu0 0
        %391 = vmatprep.subr.bf16.mxu0 0
        %392 = vmatpush1.bf16.xpose.msra.mxu0 0
        %393 = vmatprep.subr.bf16.mxu0 0
        %394 = vmatpush1.bf16.xpose.msra.mxu0 0
        %395 = vmatprep.subr.bf16.mxu0 0
        %396 = vmatpush1.bf16.xpose.msra.mxu0 0
        %397 = vmatprep.subr.bf16.mxu0 0
        %398 = vmatpush1.bf16.xpose.msra.mxu0 0
        %399 = vmatprep.subr.bf16.mxu0 0
        %400 = vmatpush1.bf16.xpose.msra.mxu0 0
        %401 = vmatprep.subr.bf16.mxu0 0
        %402 = vmatpush1.bf16.xpose.msra.mxu0 %v385
        %403 = vmatprep.subr.bf16.mxu0 0
        %404 = vmatpush2.bf16.xpose.msra.mxu0 0
        %405 = vmatprep.subr.bf16.mxu0 0
        %406 = vmatpush2.bf16.xpose.msra.mxu0 0
        %407 = vmatprep.subr.bf16.mxu0 0
        %408 = vmatpush2.bf16.xpose.msra.mxu0 0
        %409 = vmatprep.subr.bf16.mxu0 0
        %410 = vmatpush2.bf16.xpose.msra.mxu0 0
        %411 = vmatprep.subr.bf16.mxu0 0
        %412 = vmatpush2.bf16.xpose.msra.mxu0 0
        %413 = vmatprep.subr.bf16.mxu0 0
        %414 = vmatpush2.bf16.xpose.msra.mxu0 0
        %415 = vmatprep.subr.bf16.mxu0 0
        %416 = vmatpush2.bf16.xpose.msra.mxu0 0
        %417 = vmatprep.subr.bf16.mxu0 0
        %418 = vmatpush2.bf16.xpose.msra.mxu0 0
        %419 = vmatprep.mubr.bf16.mxu0 0
        %420 = vmatmul.mubr.bf16.gmra.mxu0 %v382
        %v421 = vpop.f32.mrf.mxu0
        %v422 = vadd.f32 0.0, %v421
        %v423 = vpop.f32.mrf.mxu0
        %v424 = vpop.f32.mrf.mxu0
        %v425 = vpop.f32.mrf.mxu0
        %426 = vdwg.mxu0
        %v428 = vsel %vm334, %v324, 0
        %v431 = vsel %vm334, %v328, 0
        %433 = vmatprep.subr.bf16.mxu0 0
        %434 = vmatpush1.bf16.xpose.msra.mxu0 0
        %435 = vmatprep.subr.bf16.mxu0 0
        %436 = vmatpush1.bf16.xpose.msra.mxu0 0
        %437 = vmatprep.subr.bf16.mxu0 0
        %438 = vmatpush1.bf16.xpose.msra.mxu0 0
        %439 = vmatprep.subr.bf16.mxu0 0
        %440 = vmatpush1.bf16.xpose.msra.mxu0 0
        %441 = vmatprep.subr.bf16.mxu0 0
        %442 = vmatpush1.bf16.xpose.msra.mxu0 0
        %443 = vmatprep.subr.bf16.mxu0 0
        %444 = vmatpush1.bf16.xpose.msra.mxu0 0
        %445 = vmatprep.subr.bf16.mxu0 0
        %446 = vmatpush1.bf16.xpose.msra.mxu0 0
        %447 = vmatprep.subr.bf16.mxu0 0
        %448 = vmatpush1.bf16.xpose.msra.mxu0 %v431
        %449 = vmatprep.subr.bf16.mxu0 0
        %450 = vmatpush2.bf16.xpose.msra.mxu0 0
        %451 = vmatprep.subr.bf16.mxu0 0
        %452 = vmatpush2.bf16.xpose.msra.mxu0 0
        %453 = vmatprep.subr.bf16.mxu0 0
        %454 = vmatpush2.bf16.xpose.msra.mxu0 0
        %455 = vmatprep.subr.bf16.mxu0 0
        %456 = vmatpush2.bf16.xpose.msra.mxu0 0
        %457 = vmatprep.subr.bf16.mxu0 0
        %458 = vmatpush2.bf16.xpose.msra.mxu0 0
        %459 = vmatprep.subr.bf16.mxu0 0
        %460 = vmatpush2.bf16.xpose.msra.mxu0 0
        %461 = vmatprep.subr.bf16.mxu0 0
        %462 = vmatpush2.bf16.xpose.msra.mxu0 0
        %463 = vmatprep.subr.bf16.mxu0 0
        %464 = vmatpush2.bf16.xpose.msra.mxu0 0
        %465 = vmatprep.mubr.bf16.mxu0 0
        %466 = vmatmul.mubr.bf16.gmra.mxu0 %v428
        %v467 = vpop.f32.mrf.mxu0
        %v468 = vadd.f32 0.0, %v467
        %v469 = vpop.f32.mrf.mxu0
        %v470 = vpop.f32.mrf.mxu0
        %v471 = vpop.f32.mrf.mxu0
        %472 = vdwg.mxu0
        %v474 = vsel %vm334, %v325, 0
        %v477 = vsel %vm334, %v329, 0
        %479 = vmatprep.subr.bf16.mxu0 0
        %480 = vmatpush1.bf16.xpose.msra.mxu0 0
        %481 = vmatprep.subr.bf16.mxu0 0
        %482 = vmatpush1.bf16.xpose.msra.mxu0 0
        %483 = vmatprep.subr.bf16.mxu0 0
        %484 = vmatpush1.bf16.xpose.msra.mxu0 0
        %485 = vmatprep.subr.bf16.mxu0 0
        %486 = vmatpush1.bf16.xpose.msra.mxu0 0
        %487 = vmatprep.subr.bf16.mxu0 0
        %488 = vmatpush1.bf16.xpose.msra.mxu0 0
        %489 = vmatprep.subr.bf16.mxu0 0
        %490 = vmatpush1.bf16.xpose.msra.mxu0 0
        %491 = vmatprep.subr.bf16.mxu0 0
        %492 = vmatpush1.bf16.xpose.msra.mxu0 0
        %493 = vmatprep.subr.bf16.mxu0 0
        %494 = vmatpush1.bf16.xpose.msra.mxu0 %v477
        %495 = vmatprep.subr.bf16.mxu0 0
        %496 = vmatpush2.bf16.xpose.msra.mxu0 0
        %497 = vmatprep.subr.bf16.mxu0 0
        %498 = vmatpush2.bf16.xpose.msra.mxu0 0
        %499 = vmatprep.subr.bf16.mxu0 0
        %500 = vmatpush2.bf16.xpose.msra.mxu0 0
        %501 = vmatprep.subr.bf16.mxu0 0
        %502 = vmatpush2.bf16.xpose.msra.mxu0 0
        %503 = vmatprep.subr.bf16.mxu0 0
        %504 = vmatpush2.bf16.xpose.msra.mxu0 0
        %505 = vmatprep.subr.bf16.mxu0 0
        %506 = vmatpush2.bf16.xpose.msra.mxu0 0
        %507 = vmatprep.subr.bf16.mxu0 0
        %508 = vmatpush2.bf16.xpose.msra.mxu0 0
        %509 = vmatprep.subr.bf16.mxu0 0
        %510 = vmatpush2.bf16.xpose.msra.mxu0 0
        %511 = vmatprep.mubr.bf16.mxu0 0
        %512 = vmatmul.mubr.bf16.gmra.mxu0 %v474
        %v513 = vpop.f32.mrf.mxu0
        %v514 = vadd.f32 0.0, %v513
        %v515 = vpop.f32.mrf.mxu0
        %v516 = vpop.f32.mrf.mxu0
        %v517 = vpop.f32.mrf.mxu0
        %518 = vdwg.mxu0
        %s519 = smul.u32 %s20, 8
        %v520 = vlaneseq
        %v521 = vshrl.u32 %v520, 7
        %v522 = vstv %s519
        %v523 = vadd.s32 %v522, %v521
        %s524 = smul.u32 %s21, 8
        %v525 = vlaneseq
        %v526 = vand.u32 %v525, 127
        %v527 = vstv %s524
        %v528 = vadd.s32 %v527, %v526
        %vm529 = vcmp.gt.s32.totalorder %v528, %v523
        %v530 = vsel %vm529, 1, 0
        %vm531 = vcmp.eq.s32.totalorder %v530, 1
        %v532 = vsel %vm531, -1e+30, %v376
        %v533 = vsel %vm531, -1e+30, %v422
        %v534 = vsel %vm531, -1e+30, %v468
        %v535 = vsel %vm531, -1e+30, %v514
        %v536 = vld [vmem:[#allocation2] sm:$0xff]
        %v537 = vld [vmem:[#allocation2 + $0x8] sm:$0xff]
        %v538 = vld [vmem:[#allocation2 + $0x10] sm:$0xff]
        %v539 = vld [vmem:[#allocation2 + $0x18] sm:$0xff]
        %v540 = vsel %vm334, %v532, -inf
        %541 = vmax.xlane.f32.xlu0 %v540
        %v542 = vpop.xlane.xlu0 %541
        %v543 = vsel %vm334, %v533, -inf
        %544 = vmax.xlane.f32.xlu0 %v543
        %v545 = vpop.xlane.xlu0 %544
        %v546 = vsel %vm334, %v534, -inf
        %547 = vmax.xlane.f32.xlu0 %v546
        %v548 = vpop.xlane.xlu0 %547
        %v549 = vsel %vm334, %v535, -inf
        %550 = vmax.xlane.f32.xlu0 %v549
        %v551 = vpop.xlane.xlu0 %550
        %v552 = vmax.f32 %v536, %v542
        %v553 = vmax.f32 %v537, %v545
        %v554 = vmax.f32 %v538, %v548
        %v555 = vmax.f32 %v539, %v551
        %v556 = vsub.f32 %v536, %v552
        %v557 = vsub.f32 %v537, %v553
        %v558 = vsub.f32 %v538, %v554
        %v559 = vsub.f32 %v539, %v555
        %v560 = vmul.f32 %v556, 1.442695
        %v561 = vpow.pop %v560
        %v562 = vmul.f32 %v557, 1.442695
        %v563 = vpow.pop %v562
        %v564 = vmul.f32 %v558, 1.442695
        %v565 = vpow.pop %v564
        %v566 = vmul.f32 %v559, 1.442695
        %v567 = vpow.pop %v566
        %569 = vset.pattern.permute.xlu0 0
        %570 = vperm.xlu0 %569, %v552
        %v571 = vpop.permute.xlu0 %570
        %574 = vset.pattern.permute.xlu0 0
        %575 = vperm.xlu0 %574, %v553
        %v576 = vpop.permute.xlu0 %575
        %579 = vset.pattern.permute.xlu0 0
        %580 = vperm.xlu0 %579, %v554
        %v581 = vpop.permute.xlu0 %580
        %584 = vset.pattern.permute.xlu0 0
        %585 = vperm.xlu0 %584, %v555
        %v586 = vpop.permute.xlu0 %585
        %v588 = vsub.f32 %v532, %v571
        %v589 = vsub.f32 %v533, %v576
        %v590 = vsub.f32 %v534, %v581
        %v591 = vsub.f32 %v535, %v586
        %v592 = vmul.f32 %v588, 1.442695
        %v593 = vpow.pop %v592
        %v594 = vmul.f32 %v589, 1.442695
        %v595 = vpow.pop %v594
        %v596 = vmul.f32 %v590, 1.442695
        %v597 = vpow.pop %v596
        %v598 = vmul.f32 %v591, 1.442695
        %v599 = vpow.pop %v598
        %v600 = vld [vmem:[#allocation3] sm:$0xff]
        %v601 = vld [vmem:[#allocation3 + $0x8] sm:$0xff]
        %v602 = vld [vmem:[#allocation3 + $0x10] sm:$0xff]
        %v603 = vld [vmem:[#allocation3 + $0x18] sm:$0xff]
        %v604 = vmul.f32 %v561, %v600
        %v605 = vmul.f32 %v563, %v601
        %v606 = vmul.f32 %v565, %v602
        %v607 = vmul.f32 %v567, %v603
        %v608 = vsel %vm334, %v593, 0.0
        %609 = vadd.xlane.f32.xlu0 %v608
        %v610 = vpop.xlane.xlu0 %609
        %v611 = vsel %vm334, %v595, 0.0
        %612 = vadd.xlane.f32.xlu0 %v611
        %v613 = vpop.xlane.xlu0 %612
        %v614 = vsel %vm334, %v597, 0.0
        %615 = vadd.xlane.f32.xlu0 %v614
        %v616 = vpop.xlane.xlu0 %615
        %v617 = vsel %vm334, %v599, 0.0
        %618 = vadd.xlane.f32.xlu0 %v617
        %v619 = vpop.xlane.xlu0 %618
        %v620 = vadd.f32 %v604, %v610
        %v621 = vadd.f32 %v605, %v613
        %v622 = vadd.f32 %v606, %v616
        %v623 = vadd.f32 %v607, %v619
        %vm624 = vcmask 7168
        %625 = vst.msk [vmem:[#allocation3] sm:$0xff] %vm624, %v620
        %626 = vst.msk [vmem:[#allocation3 + $0x8] sm:$0xff] %vm624, %v621
        %627 = vst.msk [vmem:[#allocation3 + $0x10] sm:$0xff] %vm624, %v622
        %628 = vst.msk [vmem:[#allocation3 + $0x18] sm:$0xff] %vm624, %v623
        %v629 = vld [vmem:[#allocation4] sm:$0xff]
        %v630 = vld [vmem:[#allocation4 + $0x8] sm:$0xff]
        %v631 = vld [vmem:[#allocation4 + $0x10] sm:$0xff]
        %v632 = vld [vmem:[#allocation4 + $0x18] sm:$0xff]
        %634 = vset.pattern.permute.xlu0 0
        %635 = vperm.xlu0 %634, %v561
        %v636 = vpop.permute.xlu0 %635
        %639 = vset.pattern.permute.xlu0 0
        %640 = vperm.xlu0 %639, %v563
        %v641 = vpop.permute.xlu0 %640
        %644 = vset.pattern.permute.xlu0 0
        %645 = vperm.xlu0 %644, %v565
        %v646 = vpop.permute.xlu0 %645
        %649 = vset.pattern.permute.xlu0 0
        %650 = vperm.xlu0 %649, %v567
        %v651 = vpop.permute.xlu0 %650
        %v653 = vmul.f32 %v636, %v629
        %v654 = vmul.f32 %v641, %v630
        %v655 = vmul.f32 %v646, %v631
        %v656 = vmul.f32 %v651, %v632
        %v657 = vpack.c.bf16 %v593, %v593
        %v658 = vpack.c.bf16 %v595, %v595
        %v659 = vpack.c.bf16 %v597, %v597
        %v660 = vpack.c.bf16 %v599, %v599
        %v662 = vsel %vm334, %v657, 0
        %vm664 = vcmask 1043456
        %v666 = vsel %vm664, %v330, 0
        %668 = vmatprep.subr.bf16.mxu0 0
        %669 = vmatpush1.bf16.msra.mxu0 0
        %670 = vmatprep.subr.bf16.mxu0 0
        %671 = vmatpush1.bf16.msra.mxu0 0
        %672 = vmatprep.subr.bf16.mxu0 0
        %673 = vmatpush1.bf16.msra.mxu0 0
        %674 = vmatprep.subr.bf16.mxu0 0
        %675 = vmatpush1.bf16.msra.mxu0 0
        %676 = vmatprep.subr.bf16.mxu0 0
        %677 = vmatpush1.bf16.msra.mxu0 0
        %678 = vmatprep.subr.bf16.mxu0 0
        %679 = vmatpush1.bf16.msra.mxu0 0
        %680 = vmatprep.subr.bf16.mxu0 0
        %681 = vmatpush1.bf16.msra.mxu0 0
        %682 = vmatprep.subr.bf16.mxu0 0
        %683 = vmatpush1.bf16.msra.mxu0 %v666
        %684 = vmatprep.subr.bf16.mxu0 0
        %685 = vmatpush2.bf16.msra.mxu0 0
        %686 = vmatprep.subr.bf16.mxu0 0
        %687 = vmatpush2.bf16.msra.mxu0 0
        %688 = vmatprep.subr.bf16.mxu0 0
        %689 = vmatpush2.bf16.msra.mxu0 0
        %690 = vmatprep.subr.bf16.mxu0 0
        %691 = vmatpush2.bf16.msra.mxu0 0
        %692 = vmatprep.subr.bf16.mxu0 0
        %693 = vmatpush2.bf16.msra.mxu0 0
        %694 = vmatprep.subr.bf16.mxu0 0
        %695 = vmatpush2.bf16.msra.mxu0 0
        %696 = vmatprep.subr.bf16.mxu0 0
        %697 = vmatpush2.bf16.msra.mxu0 0
        %698 = vmatprep.subr.bf16.mxu0 0
        %699 = vmatpush2.bf16.msra.mxu0 0
        %700 = vmatprep.mubr.bf16.mxu0 0
        %701 = vmatmul.mubr.bf16.gmra.mxu0 %v662
        %v702 = vpop.f32.mrf.mxu0
        %v703 = vadd.f32 0.0, %v702
        %v704 = vpop.f32.mrf.mxu0
        %v705 = vpop.f32.mrf.mxu0
        %v706 = vpop.f32.mrf.mxu0
        %707 = vdwg.mxu0
        %v709 = vsel %vm334, %v658, 0
        %v712 = vsel %vm664, %v331, 0
        %714 = vmatprep.subr.bf16.mxu0 0
        %715 = vmatpush1.bf16.msra.mxu0 0
        %716 = vmatprep.subr.bf16.mxu0 0
        %717 = vmatpush1.bf16.msra.mxu0 0
        %718 = vmatprep.subr.bf16.mxu0 0
        %719 = vmatpush1.bf16.msra.mxu0 0
        %720 = vmatprep.subr.bf16.mxu0 0
        %721 = vmatpush1.bf16.msra.mxu0 0
        %722 = vmatprep.subr.bf16.mxu0 0
        %723 = vmatpush1.bf16.msra.mxu0 0
        %724 = vmatprep.subr.bf16.mxu0 0
        %725 = vmatpush1.bf16.msra.mxu0 0
        %726 = vmatprep.subr.bf16.mxu0 0
        %727 = vmatpush1.bf16.msra.mxu0 0
        %728 = vmatprep.subr.bf16.mxu0 0
        %729 = vmatpush1.bf16.msra.mxu0 %v712
        %730 = vmatprep.subr.bf16.mxu0 0
        %731 = vmatpush2.bf16.msra.mxu0 0
        %732 = vmatprep.subr.bf16.mxu0 0
        %733 = vmatpush2.bf16.msra.mxu0 0
        %734 = vmatprep.subr.bf16.mxu0 0
        %735 = vmatpush2.bf16.msra.mxu0 0
        %736 = vmatprep.subr.bf16.mxu0 0
        %737 = vmatpush2.bf16.msra.mxu0 0
        %738 = vmatprep.subr.bf16.mxu0 0
        %739 = vmatpush2.bf16.msra.mxu0 0
        %740 = vmatprep.subr.bf16.mxu0 0
        %741 = vmatpush2.bf16.msra.mxu0 0
        %742 = vmatprep.subr.bf16.mxu0 0
        %743 = vmatpush2.bf16.msra.mxu0 0
        %744 = vmatprep.subr.bf16.mxu0 0
        %745 = vmatpush2.bf16.msra.mxu0 0
        %746 = vmatprep.mubr.bf16.mxu0 0
        %747 = vmatmul.mubr.bf16.gmra.mxu0 %v709
        %v748 = vpop.f32.mrf.mxu0
        %v749 = vadd.f32 0.0, %v748
        %v750 = vpop.f32.mrf.mxu0
        %v751 = vpop.f32.mrf.mxu0
        %v752 = vpop.f32.mrf.mxu0
        %753 = vdwg.mxu0
        %v755 = vsel %vm334, %v659, 0
        %v758 = vsel %vm664, %v332, 0
        %760 = vmatprep.subr.bf16.mxu0 0
        %761 = vmatpush1.bf16.msra.mxu0 0
        %762 = vmatprep.subr.bf16.mxu0 0
        %763 = vmatpush1.bf16.msra.mxu0 0
        %764 = vmatprep.subr.bf16.mxu0 0
        %765 = vmatpush1.bf16.msra.mxu0 0
        %766 = vmatprep.subr.bf16.mxu0 0
        %767 = vmatpush1.bf16.msra.mxu0 0
        %768 = vmatprep.subr.bf16.mxu0 0
        %769 = vmatpush1.bf16.msra.mxu0 0
        %770 = vmatprep.subr.bf16.mxu0 0
        %771 = vmatpush1.bf16.msra.mxu0 0
        %772 = vmatprep.subr.bf16.mxu0 0
        %773 = vmatpush1.bf16.msra.mxu0 0
        %774 = vmatprep.subr.bf16.mxu0 0
        %775 = vmatpush1.bf16.msra.mxu0 %v758
        %776 = vmatprep.subr.bf16.mxu0 0
        %777 = vmatpush2.bf16.msra.mxu0 0
        %778 = vmatprep.subr.bf16.mxu0 0
        %779 = vmatpush2.bf16.msra.mxu0 0
        %780 = vmatprep.subr.bf16.mxu0 0
        %781 = vmatpush2.bf16.msra.mxu0 0
        %782 = vmatprep.subr.bf16.mxu0 0
        %783 = vmatpush2.bf16.msra.mxu0 0
        %784 = vmatprep.subr.bf16.mxu0 0
        %785 = vmatpush2.bf16.msra.mxu0 0
        %786 = vmatprep.subr.bf16.mxu0 0
        %787 = vmatpush2.bf16.msra.mxu0 0
        %788 = vmatprep.subr.bf16.mxu0 0
        %789 = vmatpush2.bf16.msra.mxu0 0
        %790 = vmatprep.subr.bf16.mxu0 0
        %791 = vmatpush2.bf16.msra.mxu0 0
        %792 = vmatprep.mubr.bf16.mxu0 0
        %793 = vmatmul.mubr.bf16.gmra.mxu0 %v755
        %v794 = vpop.f32.mrf.mxu0
        %v795 = vadd.f32 0.0, %v794
        %v796 = vpop.f32.mrf.mxu0
        %v797 = vpop.f32.mrf.mxu0
        %v798 = vpop.f32.mrf.mxu0
        %799 = vdwg.mxu0
        %v801 = vsel %vm334, %v660, 0
        %v804 = vsel %vm664, %v333, 0
        %806 = vmatprep.subr.bf16.mxu0 0
        %807 = vmatpush1.bf16.msra.mxu0 0
        %808 = vmatprep.subr.bf16.mxu0 0
        %809 = vmatpush1.bf16.msra.mxu0 0
        %810 = vmatprep.subr.bf16.mxu0 0
        %811 = vmatpush1.bf16.msra.mxu0 0
        %812 = vmatprep.subr.bf16.mxu0 0
        %813 = vmatpush1.bf16.msra.mxu0 0
        %814 = vmatprep.subr.bf16.mxu0 0
        %815 = vmatpush1.bf16.msra.mxu0 0
        %816 = vmatprep.subr.bf16.mxu0 0
        %817 = vmatpush1.bf16.msra.mxu0 0
        %818 = vmatprep.subr.bf16.mxu0 0
        %819 = vmatpush1.bf16.msra.mxu0 0
        %820 = vmatprep.subr.bf16.mxu0 0
        %821 = vmatpush1.bf16.msra.mxu0 %v804
        %822 = vmatprep.subr.bf16.mxu0 0
        %823 = vmatpush2.bf16.msra.mxu0 0
        %824 = vmatprep.subr.bf16.mxu0 0
        %825 = vmatpush2.bf16.msra.mxu0 0
        %826 = vmatprep.subr.bf16.mxu0 0
        %827 = vmatpush2.bf16.msra.mxu0 0
        %828 = vmatprep.subr.bf16.mxu0 0
        %829 = vmatpush2.bf16.msra.mxu0 0
        %830 = vmatprep.subr.bf16.mxu0 0
        %831 = vmatpush2.bf16.msra.mxu0 0
        %832 = vmatprep.subr.bf16.mxu0 0
        %833 = vmatpush2.bf16.msra.mxu0 0
        %834 = vmatprep.subr.bf16.mxu0 0
        %835 = vmatpush2.bf16.msra.mxu0 0
        %836 = vmatprep.subr.bf16.mxu0 0
        %837 = vmatpush2.bf16.msra.mxu0 0
        %838 = vmatprep.mubr.bf16.mxu0 0
        %839 = vmatmul.mubr.bf16.gmra.mxu0 %v801
        %v840 = vpop.f32.mrf.mxu0
        %v841 = vadd.f32 0.0, %v840
        %v842 = vpop.f32.mrf.mxu0
        %v843 = vpop.f32.mrf.mxu0
        %v844 = vpop.f32.mrf.mxu0
        %845 = vdwg.mxu0
        %v846 = vadd.f32 %v653, %v703
        %v847 = vadd.f32 %v654, %v749
        %v848 = vadd.f32 %v655, %v795
        %v849 = vadd.f32 %v656, %v841
        %850 = vst.msk [vmem:[#allocation4] sm:$0xff] %vm334, %v846
        %851 = vst.msk [vmem:[#allocation4 + $0x8] sm:$0xff] %vm334, %v847
        %852 = vst.msk [vmem:[#allocation4 + $0x10] sm:$0xff] %vm334, %v848
        %853 = vst.msk [vmem:[#allocation4 + $0x18] sm:$0xff] %vm334, %v849
        %854 = vst.msk [vmem:[#allocation2] sm:$0xff] %vm624, %v552
        %855 = vst.msk [vmem:[#allocation2 + $0x8] sm:$0xff] %vm624, %v553
        %856 = vst.msk [vmem:[#allocation2 + $0x10] sm:$0xff] %vm624, %v554
        %857 = vst.msk [vmem:[#allocation2 + $0x18] sm:$0xff] %vm624, %v555
      $region40: #{multihead_attention.4} parent=31 // pred_fallthru
        _
      %p858 = scmp.eq.s32.totalorder %s21, %s20
      // Predicated region
      $region41: #{multihead_attention.4} parent=31 // pred_check
        %p859 = pneg %p858
      $region42: #{multihead_attention.4} parent=31 // pred_check_branch
        %861 = sbr.rel (%p859) target = $region44
      $region43: #{multihead_attention.4} parent=31 // pred_region
        %v862 = vld [vmem:[#allocation3] sm:$0xff]
        %v863 = vld [vmem:[#allocation3 + $0x8] sm:$0xff]
        %v864 = vld [vmem:[#allocation3 + $0x10] sm:$0xff]
        %v865 = vld [vmem:[#allocation3 + $0x18] sm:$0xff]
        %v866 = vrcp.pop %v862
        %v867 = vrcp.pop %v863
        %v868 = vrcp.pop %v864
        %v869 = vrcp.pop %v865
        %v870 = vld [vmem:[#allocation4] sm:$0xff]
        %v871 = vld [vmem:[#allocation4 + $0x8] sm:$0xff]
        %v872 = vld [vmem:[#allocation4 + $0x10] sm:$0xff]
        %v873 = vld [vmem:[#allocation4 + $0x18] sm:$0xff]
        %875 = vset.pattern.permute.xlu0 0
        %876 = vperm.xlu0 %875, %v866
        %v877 = vpop.permute.xlu0 %876
        %880 = vset.pattern.permute.xlu0 0
        %881 = vperm.xlu0 %880, %v867
        %v882 = vpop.permute.xlu0 %881
        %885 = vset.pattern.permute.xlu0 0
        %886 = vperm.xlu0 %885, %v868
        %v887 = vpop.permute.xlu0 %886
        %890 = vset.pattern.permute.xlu0 0
        %891 = vperm.xlu0 %890, %v869
        %v892 = vpop.permute.xlu0 %891
        %v894 = vmul.f32 %v870, %v877
        %v895 = vmul.f32 %v871, %v882
        %v896 = vmul.f32 %v872, %v887
        %v897 = vmul.f32 %v873, %v892
        %v898 = vpack.c.bf16 %v894, %v894
        %v899 = vpack.c.bf16 %v895, %v895
        %v900 = vpack.c.bf16 %v896, %v896
        %v901 = vpack.c.bf16 %v897, %v897
        %vm902 = vcmask 60416
        %903 = vst.msk [vmem:[%s298] sm:$0xf] %vm902, %v898
        %904 = vst.msk [vmem:[%s298 + $0x4] sm:$0xf] %vm902, %v899
        %905 = vst.msk [vmem:[%s298 + $0x8] sm:$0xf] %vm902, %v900
        %906 = vst.msk [vmem:[%s298 + $0xc] sm:$0xf] %vm902, %v901
      $region44: #{multihead_attention.4} parent=31 // pred_fallthru
        _
      %p907 = scmp.lt.s32.totalorder %s19, 1
      %s908 = scalar_select %p907, %s19, 1
      %p909 = scmp.lt.s32.totalorder %s20, 0
      %s910 = scalar_select %p909, %s20, 0
      %s911 = smul.addr %s908, 4
      %s912 = sadd.s32 %s910, %s911
      %s913 = smul.addr %s912, 4
      %s914 = scalar_lea.vmem %s3, %s913
      // Predicated region
      $region45: #{multihead_attention.4} parent=31 // pred_check
        %p915 = pneg %p145
      $region46: #{multihead_attention.4} parent=31 // pred_check_branch
        %917 = sbr.rel (%p915) target = $region48
      $region47: #{multihead_attention.4} parent=31 // pred_region
        _
      $region48: #{multihead_attention.4} parent=31 // pred_fallthru
        _
    $region32: #{multihead_attention.4} parent=5 // pred_fallthru
      _
    %p918 = scmp.le.s32.totalorder 2, %s9
    // Predicated region
    $region49: #{multihead_attention.4} parent=5 // pred_check
      %p919 = pneg %p918
    $region50: #{multihead_attention.4} parent=5 // pred_check_branch
      %921 = sbr.rel (%p919) target = $region52
    $region51: #{multihead_attention.4} parent=5 // pred_region
      %s922 = ssub.s32 %s9, 2
      // Predicated region
      $region53: #{multihead_attention.4} parent=51 // pred_check
        %p923 = pneg %p151
      $region54: #{multihead_attention.4} parent=51 // pred_check_branch
        %925 = sbr.rel (%p923) target = $region56
      $region55: #{multihead_attention.4} parent=51 // pred_region
        %p926 = scmp.lt.s32.totalorder %s22, 1
        %s927 = scalar_select %p926, %s22, 1
        %p928 = scmp.lt.s32.totalorder %s23, 0
        %s929 = scalar_select %p928, %s23, 0
        %s930 = smul.addr %s927, 4
        %s931 = sadd.s32 %s929, %s930
        %s932 = smul.addr %s931, 4
        %s933 = scalar_lea.vmem %s3, %s932
      $region56: #{multihead_attention.4} parent=51 // pred_fallthru
        _
    $region52: #{multihead_attention.4} parent=5 // pred_fallthru
      _
  $region6: #{multihead_attention.4} parent=0 // loop_footer
    %s13 = sadd.s32 1, %s9
  $region7: #{multihead_attention.4} parent=0 // loop_footer_branch
    %8 = sbr.rel target = $region3
  $region8: #{multihead_attention.4} parent=0 // loop_exit
    _

</llo_original>
